<compile_context>
chip_gen: v6e
topology: v6e:2x2x1
jax: 0.10.0
libtpu: 0.0.40
codegen_flags: <defaults>
</compile_context>

<pallas_src>
import jax
import jax.numpy as jnp
from jax.experimental import pallas as pl
from jax.experimental.pallas import tpu as pltpu

LANE = 128
SUBLANE = 8


def _round_up(n, m):
    return ((n + m - 1) // m) * m


# ----------------------------------------------------------------------------
# Fused Pallas kernel: encoder -> predictor -> decoder (9 matmuls, 1 call)
# ----------------------------------------------------------------------------
def _autoencoder_kernel(
    x_ref,                                  # (tm, Xp) bf16
    we1, be1, we2, be2, we3, be3,           # encoder
    wp1, bp1, wp2, bp2, wp3, bp3,           # predictor
    wd1z, wd1k, bd1, wd2, bd2, wd3, bd3,    # decoder (dec1 split: zhat / k parts)
    yhat_ref, zhat_ref,
):
    f32 = jnp.float32
    bf16 = jnp.bfloat16

    def dense(a_bf16, w_ref, b_ref):
        # bf16 x bf16 -> f32 accumulate on the MXU, f32 bias add on the VPU.
        return jnp.dot(a_bf16, w_ref[...], preferred_element_type=f32) + b_ref[...]

    def relu_bf16(a_f32):
        # Cast before the max: bit-identical to max-then-cast for ReLU, and the
        # max runs on half-width data (less VALU traffic / vreg pressure).
        return jnp.maximum(a_f32.astype(bf16), 0)

    x = x_ref[...]  # already bf16 (cast in the wrapper)

    # --- encoder: Linear -> ReLU -> Linear -> ReLU -> (Dropout=id) -> Linear
    h = relu_bf16(dense(x, we1, be1))
    h = relu_bf16(dense(h, we2, be2))
    k = dense(h, we3, be3)                  # latent, f32
    k_bf = k.astype(bf16)

    # --- predictor -----------------------------------------------------------
    h = relu_bf16(dense(k_bf, wp1, bp1))
    h = relu_bf16(dense(h, wp2, bp2))
    zhat = dense(h, wp3, bp3)               # f32
    zhat_ref[...] = zhat.astype(zhat_ref.dtype)

    # --- decoder; concat((zhat, k), dim=1) folded into a split first matmul --
    z_bf = zhat.astype(bf16)
    h = (jnp.dot(z_bf, wd1z[...], preferred_element_type=f32)
         + jnp.dot(k_bf, wd1k[...], preferred_element_type=f32)
         + bd1[...])
    h = relu_bf16(h)
    h = relu_bf16(dense(h, wd2, bd2))
    yhat_ref[...] = dense(h, wd3, bd3).astype(yhat_ref.dtype)


# ----------------------------------------------------------------------------
# VMEM budgeting (generation-aware)
# ----------------------------------------------------------------------------
def _vmem_capacity_bytes():
    try:
        cap = getattr(pltpu.get_tpu_info(), "vmem_capacity_bytes", None)
        if cap:
            return int(cap)
    except Exception:
        pass
    return 64 << 20  # conservative fallback (v7x-sized)


def _fused_forward(x_p, packed, *, tm):
    """x_p: (batch_p, Xp) bf16, padded. packed: padded bf16 weights / f32 biases."""
    batch_p, Xp = x_p.shape
    nb = batch_p // tm

    Hp = packed[2].shape[0]    # we2: (Hp, Hp)
    Zp = packed[10].shape[1]   # wp3: (Hp, Zp)
    Yp = packed[17].shape[1]   # wd3: (Hp, Yp)

    def row_spec(cols):
        return pl.BlockSpec((tm, cols), lambda i: (i, 0))

    def full_spec(shape):
        # Constant index_map -> weights stay resident across the batch grid.
        # NOTE: default pipelining still double-buffers them; that 2x is
        # accounted for in the VMEM budget below.
        return pl.BlockSpec(shape, lambda i: (0, 0))

    in_specs = [row_spec(Xp)] + [full_spec(a.shape) for a in packed]
    out_specs = [row_spec(Yp), row_spec(Zp)]
    out_shape = (
        jax.ShapeDtypeStruct((batch_p, Yp), jnp.float32),
        jax.ShapeDtypeStruct((batch_p, Zp), jnp.float32),
    )

    # VMEM budget:
    #   * weights/biases, double-buffered by the default pipeliner (2x),
    #   * double-buffered bf16 x tile + f32 yhat/zhat tiles,
    #   * ~6 live tm x Hp f32/bf16 intermediate activation tiles + spill slack.
    weight_bytes = 2 * sum(int(a.size) * a.dtype.itemsize for a in packed)
    io_bytes = 2 * (tm * Xp * 2 + tm * (Yp + Zp) * 4)
    interm_bytes = 6 * tm * Hp * 4
    needed = weight_bytes + io_bytes + interm_bytes + (4 << 20)

    cap = int(0.75 * _vmem_capacity_bytes())       # ~48 MiB v7x, ~96 MiB v5e/v6e
    vmem_limit = int(min(max(needed, 32 << 20), cap))

    return pl.pallas_call(
        _autoencoder_kernel,
        out_shape=out_shape,
        grid_spec=pltpu.PrefetchScalarGridSpec(
            num_scalar_prefetch=0,
            grid=(nb,),
            in_specs=in_specs,
            out_specs=out_specs,
        ),
        compiler_params=pltpu.CompilerParams(
            dimension_semantics=("parallel",),   # batch tiles shard across TCs (v7x)
            vmem_limit_bytes=vmem_limit,
        ),
    )(x_p, *packed)


# ----------------------------------------------------------------------------
# Parameter init (deterministic, mimics nn.Linear default init, (in, out) layout)
# ----------------------------------------------------------------------------
def _init_linear(key, in_dim, out_dim):
    kw, kb = jax.random.split(key)
    bound = 1.0 / jnp.sqrt(jnp.float32(in_dim))
    w = jax.random.uniform(kw, (in_dim, out_dim), jnp.float32, -bound, bound)
    b = jax.random.uniform(kb, (1, out_dim), jnp.float32, -bound, bound)
    return w, b


def init_autoencoder_params(key, X_dim, Y_dim, Z_dim, hidden_dim, latent_dim):
    keys = jax.random.split(key, 11)
    p = {}
    p["enc1"] = _init_linear(keys[0], X_dim, hidden_dim)
    p["enc2"] = _init_linear(keys[1], hidden_dim, hidden_dim)
    p["enc3"] = _init_linear(keys[2], hidden_dim, latent_dim)
    p["dec1"] = _init_linear(keys[3], latent_dim + Z_dim, hidden_dim)
    p["dec2"] = _init_linear(keys[4], hidden_dim, hidden_dim)
    p["dec3"] = _init_linear(keys[5], hidden_dim, Y_dim)
    p["pred1"] = _init_linear(keys[6], latent_dim, hidden_dim)
    p["pred2"] = _init_linear(keys[7], hidden_dim, hidden_dim)
    p["pred3"] = _init_linear(keys[8], hidden_dim, Z_dim)
    p["reg0"] = _init_linear(keys[9], hidden_dim, hidden_dim)
    p["reg1"] = _init_linear(keys[10], latent_dim, latent_dim)
    return p


# ----------------------------------------------------------------------------
# Packing: pad to lane-friendly shapes, cast matmul weights to bf16, split dec1
# ----------------------------------------------------------------------------
def pack_params(params, X_dim, Y_dim, Z_dim, hidden_dim, latent_dim):
    Xp = _round_up(X_dim, LANE)
    Yp = _round_up(Y_dim, LANE)
    Zp = _round_up(Z_dim, LANE)
    Hp = _round_up(hidden_dim, LANE)
    Lp = _round_up(latent_dim, LANE)

    def pad_w(w, rows, cols):
        # Zero padding is a correctness invariant (padded k / zhat lanes must
        # contribute nothing downstream).
        w = jnp.pad(w, ((0, rows - w.shape[0]), (0, cols - w.shape[1])))
        return w.astype(jnp.bfloat16)

    def pad_b(b, cols):
        return jnp.pad(b, ((0, 0), (0, cols - b.shape[1]))).astype(jnp.float32)

    we1, be1 = params["enc1"]; we2, be2 = params["enc2"]; we3, be3 = params["enc3"]
    wp1, bp1 = params["pred1"]; wp2, bp2 = params["pred2"]; wp3, bp3 = params["pred3"]
    wd1, bd1 = params["dec1"]; wd2, bd2 = params["dec2"]; wd3, bd3 = params["dec3"]

    # decoder input = cat((zhat, k), dim=1): rows [0, Z_dim) of dec1 weight act
    # on zhat, rows [Z_dim, Z_dim + latent_dim) act on k.
    wd1z = pad_w(wd1[:Z_dim], Zp, Hp)
    wd1k = pad_w(wd1[Z_dim:], Lp, Hp)

    # TODO(synk): low-priority — stack the Hp x Hp weights (we2, wp2, wd2) into
    # one 3-D operand to cut the number of per-step input pipelines.
    packed = (
        pad_w(we1, Xp, Hp), pad_b(be1, Hp),
        pad_w(we2, Hp, Hp), pad_b(be2, Hp),
        pad_w(we3, Hp, Lp), pad_b(be3, Lp),
        pad_w(wp1, Lp, Hp), pad_b(bp1, Hp),
        pad_w(wp2, Hp, Hp), pad_b(bp2, Hp),
        pad_w(wp3, Hp, Zp), pad_b(bp3, Zp),
        wd1z, wd1k, pad_b(bd1, Hp),
        pad_w(wd2, Hp, Hp), pad_b(bd2, Hp),
        pad_w(wd3, Hp, Yp), pad_b(bd3, Yp),
    )
    dims = {"X": X_dim, "Y": Y_dim, "Z": Z_dim, "Xp": Xp}
    return packed, dims


def _choose_batch_tile(batch):
    """Pick (padded_batch, tile) so per-step MXU work is large, but nb >= 2
    for big batches (keeps the second v7x TensorCore busy)."""
    bp = _round_up(max(batch, SUBLANE), SUBLANE)
    if bp < 256:
        return bp, bp                       # tiny batch: single tile
    for tm in (512, 256, 128):              # biggest tile that still gives nb >= 2
        if bp >= 2 * tm:
            return _round_up(batch, tm), tm
    return _round_up(batch, 128), 128


# ----------------------------------------------------------------------------
# Forward pass
# ----------------------------------------------------------------------------
def autoencoder_forward(params, packed, dims, x, l2_reg):
    batch = x.shape[0]
    X_dim, Y_dim, Z_dim, Xp = dims["X"], dims["Y"], dims["Z"], dims["Xp"]

    batch_p, tm = _choose_batch_tile(batch)
    # Pad AND cast to bf16 here: halves the x DMA bytes and drops an in-kernel cast.
    x_p = jnp.pad(x.astype(jnp.bfloat16),
                  ((0, batch_p - batch), (0, Xp - X_dim)))

    yhat_p, zhat_p = _fused_forward(x_p, packed, tm=tm)
    yhat = yhat_p[:batch, :Y_dim]
    zhat = zhat_p[:batch, :Z_dim]

    # reg_loss = l2_reg * (||W_reg0||_F + ||W_reg1||_F): input-independent tiny
    # reduction over static weights -> plain XLA (a dedicated pallas_call here
    # would be pure launch/DMA overhead).  l2_reg is traced -> no recompiles.
    w_r0 = params["reg0"][0]
    w_r1 = params["reg1"][0]
    reg_loss = l2_reg * (jnp.sqrt(jnp.sum(w_r0 * w_r0))
                         + jnp.sqrt(jnp.sum(w_r1 * w_r1)))
    return yhat, zhat, reg_loss


# ----------------------------------------------------------------------------
# Pure-JAX f32 reference (mirrors the PyTorch forward, eval-mode dropout)
# ----------------------------------------------------------------------------
def _reference_forward(params, x, l2_reg):
    def lin(p, a):
        return a @ p[0] + p[1]

    relu = lambda a: jnp.maximum(a, 0.0)
    h = relu(lin(params["enc1"], x))
    h = relu(lin(params["enc2"], h))
    k = lin(params["enc3"], h)
    h = relu(lin(params["pred1"], k))
    h = relu(lin(params["pred2"], h))
    zhat = lin(params["pred3"], h)
    cat = jnp.concatenate([zhat, k], axis=1)
    h = relu(lin(params["dec1"], cat))
    h = relu(lin(params["dec2"], h))
    yhat = lin(params["dec3"], h)
    reg = l2_reg * (jnp.sqrt(jnp.sum(params["reg0"][0] ** 2))
                    + jnp.sqrt(jnp.sum(params["reg1"][0] ** 2)))
    return yhat, zhat, reg


if __name__ == "__main__":
    # Small shapes consistent with the module's forward.
    batch = 2
    X_dim, Y_dim, Z_dim = 16, 8, 4
    hidden_dim, latent_dim = 64, 32
    dropout_rate = 0.5  # identity at inference
    l2_reg = 0.01

    key = jax.random.PRNGKey(0)
    k_params, k_x = jax.random.split(key)
    params = init_autoencoder_params(
        k_params, X_dim, Y_dim, Z_dim, hidden_dim, latent_dim
    )
    packed, dims = pack_params(params, X_dim, Y_dim, Z_dim, hidden_dim, latent_dim)
    x = jax.random.normal(k_x, (batch, X_dim), jnp.float32)

    fwd = jax.jit(
        lambda xx, ll: autoencoder_forward(params, packed, dims, xx, ll)
    )
    yhat, zhat, reg_loss = jax.block_until_ready(fwd(x, jnp.float32(l2_reg)))

    assert yhat.shape == (batch, Y_dim)
    assert zhat.shape == (batch, Z_dim)
    assert reg_loss.shape == ()

    # Correctness vs. f32 reference (bf16 matmuls in the kernel -> ~1e-2 level
    # deviation expected; loose tolerances).
    yhat_r, zhat_r, reg_r = _reference_forward(params, x, jnp.float32(l2_reg))
    assert float(jnp.max(jnp.abs(yhat - yhat_r))) < 1e-1
    assert float(jnp.max(jnp.abs(zhat - zhat_r))) < 1e-1
    assert abs(float(reg_loss) - float(reg_r)) < 1e-4

    print("KERNEL_OK")
</pallas_src>

<mosaic_0001>
module attributes {stable_mosaic.version = 11 : i64} {
  func.func @_autoencoder_kernel(%arg0: i32, %arg1: memref<8x128xbf16, #tpu.memory_space<vmem>>, %arg2: memref<128x128xbf16, #tpu.memory_space<vmem>>, %arg3: memref<1x128xf32, #tpu.memory_space<vmem>>, %arg4: memref<128x128xbf16, #tpu.memory_space<vmem>>, %arg5: memref<1x128xf32, #tpu.memory_space<vmem>>, %arg6: memref<128x128xbf16, #tpu.memory_space<vmem>>, %arg7: memref<1x128xf32, #tpu.memory_space<vmem>>, %arg8: memref<128x128xbf16, #tpu.memory_space<vmem>>, %arg9: memref<1x128xf32, #tpu.memory_space<vmem>>, %arg10: memref<128x128xbf16, #tpu.memory_space<vmem>>, %arg11: memref<1x128xf32, #tpu.memory_space<vmem>>, %arg12: memref<128x128xbf16, #tpu.memory_space<vmem>>, %arg13: memref<1x128xf32, #tpu.memory_space<vmem>>, %arg14: memref<128x128xbf16, #tpu.memory_space<vmem>>, %arg15: memref<128x128xbf16, #tpu.memory_space<vmem>>, %arg16: memref<1x128xf32, #tpu.memory_space<vmem>>, %arg17: memref<128x128xbf16, #tpu.memory_space<vmem>>, %arg18: memref<1x128xf32, #tpu.memory_space<vmem>>, %arg19: memref<128x128xbf16, #tpu.memory_space<vmem>>, %arg20: memref<1x128xf32, #tpu.memory_space<vmem>>, %arg21: memref<8x128xf32, #tpu.memory_space<vmem>>, %arg22: memref<8x128xf32, #tpu.memory_space<vmem>>) attributes {dimension_semantics = [#tpu.dimension_semantics<parallel>], iteration_bounds = array<i64: 1>, scalar_prefetch = 0 : i64, scratch_operands = 0 : i64, tpu.core_type = #tpu.core_type<tc>, window_params = [{transform_indices = @transform_0, window_bounds = array<i64: 8, 128>}, {pipeline_mode = #tpu.pipeline_mode<synchronous>, transform_indices = @transform_1, window_bounds = array<i64: 128, 128>}, {pipeline_mode = #tpu.pipeline_mode<synchronous>, transform_indices = @transform_2, window_bounds = array<i64: 1, 128>}, {pipeline_mode = #tpu.pipeline_mode<synchronous>, transform_indices = @transform_3, window_bounds = array<i64: 128, 128>}, {pipeline_mode = #tpu.pipeline_mode<synchronous>, transform_indices = @transform_4, window_bounds = array<i64: 1, 128>}, {pipeline_mode = #tpu.pipeline_mode<synchronous>, transform_indices = @transform_5, window_bounds = array<i64: 128, 128>}, {pipeline_mode = #tpu.pipeline_mode<synchronous>, transform_indices = @transform_6, window_bounds = array<i64: 1, 128>}, {pipeline_mode = #tpu.pipeline_mode<synchronous>, transform_indices = @transform_7, window_bounds = array<i64: 128, 128>}, {pipeline_mode = #tpu.pipeline_mode<synchronous>, transform_indices = @transform_8, window_bounds = array<i64: 1, 128>}, {pipeline_mode = #tpu.pipeline_mode<synchronous>, transform_indices = @transform_9, window_bounds = array<i64: 128, 128>}, {pipeline_mode = #tpu.pipeline_mode<synchronous>, transform_indices = @transform_10, window_bounds = array<i64: 1, 128>}, {pipeline_mode = #tpu.pipeline_mode<synchronous>, transform_indices = @transform_11, window_bounds = array<i64: 128, 128>}, {pipeline_mode = #tpu.pipeline_mode<synchronous>, transform_indices = @transform_12, window_bounds = array<i64: 1, 128>}, {pipeline_mode = #tpu.pipeline_mode<synchronous>, transform_indices = @transform_13, window_bounds = array<i64: 128, 128>}, {pipeline_mode = #tpu.pipeline_mode<synchronous>, transform_indices = @transform_14, window_bounds = array<i64: 128, 128>}, {pipeline_mode = #tpu.pipeline_mode<synchronous>, transform_indices = @transform_15, window_bounds = array<i64: 1, 128>}, {pipeline_mode = #tpu.pipeline_mode<synchronous>, transform_indices = @transform_16, window_bounds = array<i64: 128, 128>}, {pipeline_mode = #tpu.pipeline_mode<synchronous>, transform_indices = @transform_17, window_bounds = array<i64: 1, 128>}, {pipeline_mode = #tpu.pipeline_mode<synchronous>, transform_indices = @transform_18, window_bounds = array<i64: 128, 128>}, {pipeline_mode = #tpu.pipeline_mode<synchronous>, transform_indices = @transform_19, window_bounds = array<i64: 1, 128>}, {transform_indices = @transform_20, window_bounds = array<i64: 8, 128>}, {transform_indices = @transform_21, window_bounds = array<i64: 8, 128>}]} {
    %c0 = arith.constant 0 : index
    %c0_0 = arith.constant 0 : index
    %0 = vector.load %arg1[%c0, %c0_0] : memref<8x128xbf16, #tpu.memory_space<vmem>>, vector<8x128xbf16>
    %c0_1 = arith.constant 0 : index
    %c0_2 = arith.constant 0 : index
    %1 = vector.load %arg2[%c0_1, %c0_2] : memref<128x128xbf16, #tpu.memory_space<vmem>>, vector<128x128xbf16>
    %cst = arith.constant dense<0.000000e+00> : vector<8x128xf32>
    %2 = tpu.matmul %0, %1, %cst {dimension_numbers = #tpu.dot_dimension_numbers<[1], [0], [0], [1], [0, 0, 1, 1], [], []>} : vector<8x128xbf16>, vector<128x128xbf16>, vector<8x128xf32> -> vector<8x128xf32>
    %c0_3 = arith.constant 0 : index
    %c0_4 = arith.constant 0 : index
    %3 = vector.load %arg3[%c0_3, %c0_4] : memref<1x128xf32, #tpu.memory_space<vmem>>, vector<1x128xf32>
    %4 = vector.broadcast %3 : vector<1x128xf32> to vector<8x128xf32>
    %5 = arith.addf %2, %4 : vector<8x128xf32>
    %6 = arith.truncf %5 : vector<8x128xf32> to vector<8x128xbf16>
    %cst_5 = arith.constant 0.000000e+00 : bf16
    %7 = vector.broadcast %cst_5 : bf16 to vector<8x128xbf16>
    %8 = arith.maximumf %6, %7 : vector<8x128xbf16>
    %c0_6 = arith.constant 0 : index
    %c0_7 = arith.constant 0 : index
    %9 = vector.load %arg4[%c0_6, %c0_7] : memref<128x128xbf16, #tpu.memory_space<vmem>>, vector<128x128xbf16>
    %cst_8 = arith.constant dense<0.000000e+00> : vector<8x128xf32>
    %10 = tpu.matmul %8, %9, %cst_8 {dimension_numbers = #tpu.dot_dimension_numbers<[1], [0], [0], [1], [0, 0, 1, 1], [], []>} : vector<8x128xbf16>, vector<128x128xbf16>, vector<8x128xf32> -> vector<8x128xf32>
    %c0_9 = arith.constant 0 : index
    %c0_10 = arith.constant 0 : index
    %11 = vector.load %arg5[%c0_9, %c0_10] : memref<1x128xf32, #tpu.memory_space<vmem>>, vector<1x128xf32>
    %12 = vector.broadcast %11 : vector<1x128xf32> to vector<8x128xf32>
    %13 = arith.addf %10, %12 : vector<8x128xf32>
    %14 = arith.truncf %13 : vector<8x128xf32> to vector<8x128xbf16>
    %cst_11 = arith.constant 0.000000e+00 : bf16
    %15 = vector.broadcast %cst_11 : bf16 to vector<8x128xbf16>
    %16 = arith.maximumf %14, %15 : vector<8x128xbf16>
    %c0_12 = arith.constant 0 : index
    %c0_13 = arith.constant 0 : index
    %17 = vector.load %arg6[%c0_12, %c0_13] : memref<128x128xbf16, #tpu.memory_space<vmem>>, vector<128x128xbf16>
    %cst_14 = arith.constant dense<0.000000e+00> : vector<8x128xf32>
    %18 = tpu.matmul %16, %17, %cst_14 {dimension_numbers = #tpu.dot_dimension_numbers<[1], [0], [0], [1], [0, 0, 1, 1], [], []>} : vector<8x128xbf16>, vector<128x128xbf16>, vector<8x128xf32> -> vector<8x128xf32>
    %c0_15 = arith.constant 0 : index
    %c0_16 = arith.constant 0 : index
    %19 = vector.load %arg7[%c0_15, %c0_16] : memref<1x128xf32, #tpu.memory_space<vmem>>, vector<1x128xf32>
    %20 = vector.broadcast %19 : vector<1x128xf32> to vector<8x128xf32>
    %21 = arith.addf %18, %20 : vector<8x128xf32>
    %22 = arith.truncf %21 : vector<8x128xf32> to vector<8x128xbf16>
    %c0_17 = arith.constant 0 : index
    %c0_18 = arith.constant 0 : index
    %23 = vector.load %arg8[%c0_17, %c0_18] : memref<128x128xbf16, #tpu.memory_space<vmem>>, vector<128x128xbf16>
    %cst_19 = arith.constant dense<0.000000e+00> : vector<8x128xf32>
    %24 = tpu.matmul %22, %23, %cst_19 {dimension_numbers = #tpu.dot_dimension_numbers<[1], [0], [0], [1], [0, 0, 1, 1], [], []>} : vector<8x128xbf16>, vector<128x128xbf16>, vector<8x128xf32> -> vector<8x128xf32>
    %c0_20 = arith.constant 0 : index
    %c0_21 = arith.constant 0 : index
    %25 = vector.load %arg9[%c0_20, %c0_21] : memref<1x128xf32, #tpu.memory_space<vmem>>, vector<1x128xf32>
    %26 = vector.broadcast %25 : vector<1x128xf32> to vector<8x128xf32>
    %27 = arith.addf %24, %26 : vector<8x128xf32>
    %28 = arith.truncf %27 : vector<8x128xf32> to vector<8x128xbf16>
    %cst_22 = arith.constant 0.000000e+00 : bf16
    %29 = vector.broadcast %cst_22 : bf16 to vector<8x128xbf16>
    %30 = arith.maximumf %28, %29 : vector<8x128xbf16>
    %c0_23 = arith.constant 0 : index
    %c0_24 = arith.constant 0 : index
    %31 = vector.load %arg10[%c0_23, %c0_24] : memref<128x128xbf16, #tpu.memory_space<vmem>>, vector<128x128xbf16>
    %cst_25 = arith.constant dense<0.000000e+00> : vector<8x128xf32>
    %32 = tpu.matmul %30, %31, %cst_25 {dimension_numbers = #tpu.dot_dimension_numbers<[1], [0], [0], [1], [0, 0, 1, 1], [], []>} : vector<8x128xbf16>, vector<128x128xbf16>, vector<8x128xf32> -> vector<8x128xf32>
    %c0_26 = arith.constant 0 : index
    %c0_27 = arith.constant 0 : index
    %33 = vector.load %arg11[%c0_26, %c0_27] : memref<1x128xf32, #tpu.memory_space<vmem>>, vector<1x128xf32>
    %34 = vector.broadcast %33 : vector<1x128xf32> to vector<8x128xf32>
    %35 = arith.addf %32, %34 : vector<8x128xf32>
    %36 = arith.truncf %35 : vector<8x128xf32> to vector<8x128xbf16>
    %cst_28 = arith.constant 0.000000e+00 : bf16
    %37 = vector.broadcast %cst_28 : bf16 to vector<8x128xbf16>
    %38 = arith.maximumf %36, %37 : vector<8x128xbf16>
    %c0_29 = arith.constant 0 : index
    %c0_30 = arith.constant 0 : index
    %39 = vector.load %arg12[%c0_29, %c0_30] : memref<128x128xbf16, #tpu.memory_space<vmem>>, vector<128x128xbf16>
    %cst_31 = arith.constant dense<0.000000e+00> : vector<8x128xf32>
    %40 = tpu.matmul %38, %39, %cst_31 {dimension_numbers = #tpu.dot_dimension_numbers<[1], [0], [0], [1], [0, 0, 1, 1], [], []>} : vector<8x128xbf16>, vector<128x128xbf16>, vector<8x128xf32> -> vector<8x128xf32>
    %c0_32 = arith.constant 0 : index
    %c0_33 = arith.constant 0 : index
    %41 = vector.load %arg13[%c0_32, %c0_33] : memref<1x128xf32, #tpu.memory_space<vmem>>, vector<1x128xf32>
    %42 = vector.broadcast %41 : vector<1x128xf32> to vector<8x128xf32>
    %43 = arith.addf %40, %42 : vector<8x128xf32>
    %c0_34 = arith.constant 0 : index
    %c0_35 = arith.constant 0 : index
    %44 = vector.load %arg22[%c0_34, %c0_35] : memref<8x128xf32, #tpu.memory_space<vmem>>, vector<8x128xf32>
    tpu.vector_store %arg22[%c0_34, %c0_35], %43 {strides = array<i32>} : memref<8x128xf32, #tpu.memory_space<vmem>>, vector<8x128xf32>,
    %45 = arith.truncf %43 : vector<8x128xf32> to vector<8x128xbf16>
    %c0_36 = arith.constant 0 : index
    %c0_37 = arith.constant 0 : index
    %46 = vector.load %arg14[%c0_36, %c0_37] : memref<128x128xbf16, #tpu.memory_space<vmem>>, vector<128x128xbf16>
    %cst_38 = arith.constant dense<0.000000e+00> : vector<8x128xf32>
    %47 = tpu.matmul %45, %46, %cst_38 {dimension_numbers = #tpu.dot_dimension_numbers<[1], [0], [0], [1], [0, 0, 1, 1], [], []>} : vector<8x128xbf16>, vector<128x128xbf16>, vector<8x128xf32> -> vector<8x128xf32>
    %c0_39 = arith.constant 0 : index
    %c0_40 = arith.constant 0 : index
    %48 = vector.load %arg15[%c0_39, %c0_40] : memref<128x128xbf16, #tpu.memory_space<vmem>>, vector<128x128xbf16>
    %cst_41 = arith.constant dense<0.000000e+00> : vector<8x128xf32>
    %49 = tpu.matmul %22, %48, %cst_41 {dimension_numbers = #tpu.dot_dimension_numbers<[1], [0], [0], [1], [0, 0, 1, 1], [], []>} : vector<8x128xbf16>, vector<128x128xbf16>, vector<8x128xf32> -> vector<8x128xf32>
    %50 = arith.addf %47, %49 : vector<8x128xf32>
    %c0_42 = arith.constant 0 : index
    %c0_43 = arith.constant 0 : index
    %51 = vector.load %arg16[%c0_42, %c0_43] : memref<1x128xf32, #tpu.memory_space<vmem>>, vector<1x128xf32>
    %52 = vector.broadcast %51 : vector<1x128xf32> to vector<8x128xf32>
    %53 = arith.addf %50, %52 : vector<8x128xf32>
    %54 = arith.truncf %53 : vector<8x128xf32> to vector<8x128xbf16>
    %cst_44 = arith.constant 0.000000e+00 : bf16
    %55 = vector.broadcast %cst_44 : bf16 to vector<8x128xbf16>
    %56 = arith.maximumf %54, %55 : vector<8x128xbf16>
    %c0_45 = arith.constant 0 : index
    %c0_46 = arith.constant 0 : index
    %57 = vector.load %arg17[%c0_45, %c0_46] : memref<128x128xbf16, #tpu.memory_space<vmem>>, vector<128x128xbf16>
    %cst_47 = arith.constant dense<0.000000e+00> : vector<8x128xf32>
    %58 = tpu.matmul %56, %57, %cst_47 {dimension_numbers = #tpu.dot_dimension_numbers<[1], [0], [0], [1], [0, 0, 1, 1], [], []>} : vector<8x128xbf16>, vector<128x128xbf16>, vector<8x128xf32> -> vector<8x128xf32>
    %c0_48 = arith.constant 0 : index
    %c0_49 = arith.constant 0 : index
    %59 = vector.load %arg18[%c0_48, %c0_49] : memref<1x128xf32, #tpu.memory_space<vmem>>, vector<1x128xf32>
    %60 = vector.broadcast %59 : vector<1x128xf32> to vector<8x128xf32>
    %61 = arith.addf %58, %60 : vector<8x128xf32>
    %62 = arith.truncf %61 : vector<8x128xf32> to vector<8x128xbf16>
    %cst_50 = arith.constant 0.000000e+00 : bf16
    %63 = vector.broadcast %cst_50 : bf16 to vector<8x128xbf16>
    %64 = arith.maximumf %62, %63 : vector<8x128xbf16>
    %c0_51 = arith.constant 0 : index
    %c0_52 = arith.constant 0 : index
    %65 = vector.load %arg19[%c0_51, %c0_52] : memref<128x128xbf16, #tpu.memory_space<vmem>>, vector<128x128xbf16>
    %cst_53 = arith.constant dense<0.000000e+00> : vector<8x128xf32>
    %66 = tpu.matmul %64, %65, %cst_53 {dimension_numbers = #tpu.dot_dimension_numbers<[1], [0], [0], [1], [0, 0, 1, 1], [], []>} : vector<8x128xbf16>, vector<128x128xbf16>, vector<8x128xf32> -> vector<8x128xf32>
    %c0_54 = arith.constant 0 : index
    %c0_55 = arith.constant 0 : index
    %67 = vector.load %arg20[%c0_54, %c0_55] : memref<1x128xf32, #tpu.memory_space<vmem>>, vector<1x128xf32>
    %68 = vector.broadcast %67 : vector<1x128xf32> to vector<8x128xf32>
    %69 = arith.addf %66, %68 : vector<8x128xf32>
    %c0_56 = arith.constant 0 : index
    %c0_57 = arith.constant 0 : index
    %70 = vector.load %arg21[%c0_56, %c0_57] : memref<8x128xf32, #tpu.memory_space<vmem>>, vector<8x128xf32>
    tpu.vector_store %arg21[%c0_56, %c0_57], %69 {strides = array<i32>} : memref<8x128xf32, #tpu.memory_space<vmem>>, vector<8x128xf32>,
    return
  }
  func.func @transform_0(%arg0: i32) -> (i32, i32) {
    %c0_i32 = arith.constant 0 : i32
    %c0_i32_0 = arith.constant 0 : i32
    return %arg0, %c0_i32 : i32, i32
  }
  func.func @transform_1(%arg0: i32) -> (i32, i32) {
    %c0_i32 = arith.constant 0 : i32
    %c0_i32_0 = arith.constant 0 : i32
    %c0_i32_1 = arith.constant 0 : i32
    return %c0_i32, %c0_i32_0 : i32, i32
  }
  func.func @transform_2(%arg0: i32) -> (i32, i32) {
    %c0_i32 = arith.constant 0 : i32
    %c0_i32_0 = arith.constant 0 : i32
    %c0_i32_1 = arith.constant 0 : i32
    return %c0_i32, %c0_i32_0 : i32, i32
  }
  func.func @transform_3(%arg0: i32) -> (i32, i32) {
    %c0_i32 = arith.constant 0 : i32
    %c0_i32_0 = arith.constant 0 : i32
    %c0_i32_1 = arith.constant 0 : i32
    return %c0_i32, %c0_i32_0 : i32, i32
  }
  func.func @transform_4(%arg0: i32) -> (i32, i32) {
    %c0_i32 = arith.constant 0 : i32
    %c0_i32_0 = arith.constant 0 : i32
    %c0_i32_1 = arith.constant 0 : i32
    return %c0_i32, %c0_i32_0 : i32, i32
  }
  func.func @transform_5(%arg0: i32) -> (i32, i32) {
    %c0_i32 = arith.constant 0 : i32
    %c0_i32_0 = arith.constant 0 : i32
    %c0_i32_1 = arith.constant 0 : i32
    return %c0_i32, %c0_i32_0 : i32, i32
  }
  func.func @transform_6(%arg0: i32) -> (i32, i32) {
    %c0_i32 = arith.constant 0 : i32
    %c0_i32_0 = arith.constant 0 : i32
    %c0_i32_1 = arith.constant 0 : i32
    return %c0_i32, %c0_i32_0 : i32, i32
  }
  func.func @transform_7(%arg0: i32) -> (i32, i32) {
    %c0_i32 = arith.constant 0 : i32
    %c0_i32_0 = arith.constant 0 : i32
    %c0_i32_1 = arith.constant 0 : i32
    return %c0_i32, %c0_i32_0 : i32, i32
  }
  func.func @transform_8(%arg0: i32) -> (i32, i32) {
    %c0_i32 = arith.constant 0 : i32
    %c0_i32_0 = arith.constant 0 : i32
    %c0_i32_1 = arith.constant 0 : i32
    return %c0_i32, %c0_i32_0 : i32, i32
  }
  func.func @transform_9(%arg0: i32) -> (i32, i32) {
    %c0_i32 = arith.constant 0 : i32
    %c0_i32_0 = arith.constant 0 : i32
    %c0_i32_1 = arith.constant 0 : i32
    return %c0_i32, %c0_i32_0 : i32, i32
  }
  func.func @transform_10(%arg0: i32) -> (i32, i32) {
    %c0_i32 = arith.constant 0 : i32
    %c0_i32_0 = arith.constant 0 : i32
    %c0_i32_1 = arith.constant 0 : i32
    return %c0_i32, %c0_i32_0 : i32, i32
  }
  func.func @transform_11(%arg0: i32) -> (i32, i32) {
    %c0_i32 = arith.constant 0 : i32
    %c0_i32_0 = arith.constant 0 : i32
    %c0_i32_1 = arith.constant 0 : i32
    return %c0_i32, %c0_i32_0 : i32, i32
  }
  func.func @transform_12(%arg0: i32) -> (i32, i32) {
    %c0_i32 = arith.constant 0 : i32
    %c0_i32_0 = arith.constant 0 : i32
    %c0_i32_1 = arith.constant 0 : i32
    return %c0_i32, %c0_i32_0 : i32, i32
  }
  func.func @transform_13(%arg0: i32) -> (i32, i32) {
    %c0_i32 = arith.constant 0 : i32
    %c0_i32_0 = arith.constant 0 : i32
    %c0_i32_1 = arith.constant 0 : i32
    return %c0_i32, %c0_i32_0 : i32, i32
  }
  func.func @transform_14(%arg0: i32) -> (i32, i32) {
    %c0_i32 = arith.constant 0 : i32
    %c0_i32_0 = arith.constant 0 : i32
    %c0_i32_1 = arith.constant 0 : i32
    return %c0_i32, %c0_i32_0 : i32, i32
  }
  func.func @transform_15(%arg0: i32) -> (i32, i32) {
    %c0_i32 = arith.constant 0 : i32
    %c0_i32_0 = arith.constant 0 : i32
    %c0_i32_1 = arith.constant 0 : i32
    return %c0_i32, %c0_i32_0 : i32, i32
  }
  func.func @transform_16(%arg0: i32) -> (i32, i32) {
    %c0_i32 = arith.constant 0 : i32
    %c0_i32_0 = arith.constant 0 : i32
    %c0_i32_1 = arith.constant 0 : i32
    return %c0_i32, %c0_i32_0 : i32, i32
  }
  func.func @transform_17(%arg0: i32) -> (i32, i32) {
    %c0_i32 = arith.constant 0 : i32
    %c0_i32_0 = arith.constant 0 : i32
    %c0_i32_1 = arith.constant 0 : i32
    return %c0_i32, %c0_i32_0 : i32, i32
  }
  func.func @transform_18(%arg0: i32) -> (i32, i32) {
    %c0_i32 = arith.constant 0 : i32
    %c0_i32_0 = arith.constant 0 : i32
    %c0_i32_1 = arith.constant 0 : i32
    return %c0_i32, %c0_i32_0 : i32, i32
  }
  func.func @transform_19(%arg0: i32) -> (i32, i32) {
    %c0_i32 = arith.constant 0 : i32
    %c0_i32_0 = arith.constant 0 : i32
    %c0_i32_1 = arith.constant 0 : i32
    return %c0_i32, %c0_i32_0 : i32, i32
  }
  func.func @transform_20(%arg0: i32) -> (i32, i32) {
    %c0_i32 = arith.constant 0 : i32
    %c0_i32_0 = arith.constant 0 : i32
    return %arg0, %c0_i32 : i32, i32
  }
  func.func @transform_21(%arg0: i32) -> (i32, i32) {
    %c0_i32 = arith.constant 0 : i32
    %c0_i32_0 = arith.constant 0 : i32
    return %arg0, %c0_i32 : i32, i32
  }
}

</mosaic_0001>

<llo_original>
// kernel: _lambda_.1
$region0: #{_lambda_.1}
  #allocation0 [shape = 'u32[]', space=smem, size = 0x4, offset = 0x4, fixed_abs, tag = 'smem constant byte address 0x4 - core index']
  #allocation1 [shape = 'u32[144,128]{1,0:T(1,128)}', space=vmem, size = 0x12000, scoped, tag = 'internal scratch']
  %s0 = inlined_call_operand.vmem [shape: bf16[8,128], index: 0, kind: input, shape index: {}]
  %s1 = inlined_call_operand.hbm [shape: bf16[128,128], index: 1, kind: input, shape index: {}]
  %s2 = inlined_call_operand.vmem [shape: f32[1,128], index: 2, kind: input, shape index: {}]
  %s3 = inlined_call_operand.hbm [shape: bf16[128,128], index: 3, kind: input, shape index: {}]
  %s4 = inlined_call_operand.vmem [shape: f32[1,128], index: 4, kind: input, shape index: {}]
  %s5 = inlined_call_operand.hbm [shape: bf16[128,128], index: 5, kind: input, shape index: {}]
  %s6 = inlined_call_operand.vmem [shape: f32[1,128], index: 6, kind: input, shape index: {}]
  %s7 = inlined_call_operand.hbm [shape: bf16[128,128], index: 7, kind: input, shape index: {}]
  %s8 = inlined_call_operand.vmem [shape: f32[1,128], index: 8, kind: input, shape index: {}]
  %s9 = inlined_call_operand.hbm [shape: bf16[128,128], index: 9, kind: input, shape index: {}]
  %s10 = inlined_call_operand.vmem [shape: f32[1,128], index: 10, kind: input, shape index: {}]
  %s11 = inlined_call_operand.hbm [shape: bf16[128,128], index: 11, kind: input, shape index: {}]
  %s12 = inlined_call_operand.vmem [shape: f32[1,128], index: 12, kind: input, shape index: {}]
  %s13 = inlined_call_operand.hbm [shape: bf16[128,128], index: 13, kind: input, shape index: {}]
  %s14 = inlined_call_operand.hbm [shape: bf16[128,128], index: 14, kind: input, shape index: {}]
  %s15 = inlined_call_operand.vmem [shape: f32[1,128], index: 15, kind: input, shape index: {}]
  %s16 = inlined_call_operand.hbm [shape: bf16[128,128], index: 16, kind: input, shape index: {}]
  %s17 = inlined_call_operand.vmem [shape: f32[1,128], index: 17, kind: input, shape index: {}]
  %s18 = inlined_call_operand.hbm [shape: bf16[128,128], index: 18, kind: input, shape index: {}]
  %s19 = inlined_call_operand.vmem [shape: f32[1,128], index: 19, kind: input, shape index: {}]
  %s20 = inlined_call_operand.vmem [shape: f32[8,128], index: 20, kind: output, shape index: {0}]
  %s21 = inlined_call_operand.vmem [shape: f32[8,128], index: 21, kind: output, shape index: {1}]
  %22 = xla_tuple %s20, %s21
  %s23 = sld [smem:[#allocation0]]
  $region138: #{_lambda_.1} parent=0
    _
  %s25 = ssub.s32 1, %s23
  %s26 = scalar_select 0, %s25, %s23
  $region1: #{_lambda_.1} parent=0
    #allocation2 [shape = 'u8[32768]{0}', space=vmem, size = 0x8000, scoped, tag = 'input window, operand 1, single buffered']
    #allocation3 [shape = 's32[1]{0}', space=sflag, size = 0x4, scoped, tag = 'scoped memory for _lambda_.1']
    #allocation4 [shape = 'u8[32768]{0}', space=vmem, size = 0x8000, scoped, tag = 'input window, operand 3, single buffered']
    #allocation5 [shape = 's32[1]{0}', space=sflag, size = 0x4, scoped, tag = 'scoped memory for _lambda_.1']
    #allocation6 [shape = 'u8[32768]{0}', space=vmem, size = 0x8000, scoped, tag = 'input window, operand 5, single buffered']
    #allocation7 [shape = 'u8[32768]{0}', space=vmem, size = 0x8000, scoped, tag = 'input window, operand 7, single buffered']
    #allocation8 [shape = 's32[1]{0}', space=sflag, size = 0x4, scoped, tag = 'scoped memory for _lambda_.1']
    #allocation9 [shape = 'u8[32768]{0}', space=vmem, size = 0x8000, scoped, tag = 'input window, operand 9, single buffered']
    #allocation10 [shape = 'u8[32768]{0}', space=vmem, size = 0x8000, scoped, tag = 'input window, operand 11, single buffered']
    #allocation11 [shape = 's32[1]{0}', space=sflag, size = 0x4, scoped, tag = 'scoped memory for _lambda_.1']
    #allocation12 [shape = 'u8[32768]{0}', space=vmem, size = 0x8000, scoped, tag = 'input window, operand 13, single buffered']
    #allocation13 [shape = 'u8[32768]{0}', space=vmem, size = 0x8000, scoped, tag = 'input window, operand 14, single buffered']
    #allocation14 [shape = 's32[1]{0}', space=sflag, size = 0x4, scoped, tag = 'scoped memory for _lambda_.1']
    #allocation15 [shape = 'u8[32768]{0}', space=vmem, size = 0x8000, scoped, tag = 'input window, operand 16, single buffered']
    #allocation16 [shape = 'u8[32768]{0}', space=vmem, size = 0x8000, scoped, tag = 'input window, operand 18, single buffered']
    #allocation17 [shape = 's32[1]{0}', space=sflag, size = 0x4, scoped, tag = 'scoped memory for _lambda_.1']
    %27 = vsyncpa [#allocation3], 0
    %28 = vsyncpa [#allocation5], 0
    %29 = vsyncpa [#allocation8], 0
    %30 = vsyncpa [#allocation11], 0
    %31 = vsyncpa [#allocation14], 0
    %32 = vsyncpa [#allocation17], 0
    // Predicated region
    $region2: #{_lambda_.1} parent=1 // pred_check
      _
    $region3: #{_lambda_.1} parent=1 // pred_check_branch
      %34 = sbr.rel (0) target = $region5
    $region4: #{_lambda_.1} parent=1 // pred_region
      _
    $region5: #{_lambda_.1} parent=1 // pred_fallthru
      _
    // Predicated region
    $region6: #{_lambda_.1} parent=1 // pred_check
      _
    $region7: #{_lambda_.1} parent=1 // pred_check_branch
      %36 = sbr.rel (0) target = $region9
    $region8: #{_lambda_.1} parent=1 // pred_region
      %s38 = ssub.s32 1024, 1024
      %39 = vsyncadd [#allocation3], %s38
      %s40 = sshll.u32 [#allocation2], 4
      %s41 = int_to_ptr.vmem [resolvable:$true] %s40
      %46 = dma.hbm_to_vmem [thread:$0]  %s1, 1024, %s41, [#allocation3], 64, 64, 4
    $region9: #{_lambda_.1} parent=1 // pred_fallthru
      _
    // Predicated region
    $region10: #{_lambda_.1} parent=1 // pred_check
      _
    $region11: #{_lambda_.1} parent=1 // pred_check_branch
      %48 = sbr.rel (0) target = $region13
    $region12: #{_lambda_.1} parent=1 // pred_region
      _
    $region13: #{_lambda_.1} parent=1 // pred_fallthru
      _
    // Predicated region
    $region14: #{_lambda_.1} parent=1 // pred_check
      _
    $region15: #{_lambda_.1} parent=1 // pred_check_branch
      %50 = sbr.rel (0) target = $region17
    $region16: #{_lambda_.1} parent=1 // pred_region
      %s52 = ssub.s32 1024, 1024
      %53 = vsyncadd [#allocation5], %s52
      %s54 = sshll.u32 [#allocation4], 4
      %s55 = int_to_ptr.vmem [resolvable:$true] %s54
      %60 = dma.hbm_to_vmem [thread:$0]  %s3, 1024, %s55, [#allocation5], 64, 64, 4
    $region17: #{_lambda_.1} parent=1 // pred_fallthru
      _
    // Predicated region
    $region18: #{_lambda_.1} parent=1 // pred_check
      _
    $region19: #{_lambda_.1} parent=1 // pred_check_branch
      %62 = sbr.rel (0) target = $region21
    $region20: #{_lambda_.1} parent=1 // pred_region
      _
    $region21: #{_lambda_.1} parent=1 // pred_fallthru
      _
    // Predicated region
    $region22: #{_lambda_.1} parent=1 // pred_check
      _
    $region23: #{_lambda_.1} parent=1 // pred_check_branch
      %64 = sbr.rel (0) target = $region25
    $region24: #{_lambda_.1} parent=1 // pred_region
      %s66 = ssub.s32 1024, 1024
      %67 = vsyncadd [#allocation5], %s66
      %s68 = sshll.u32 [#allocation6], 4
      %s69 = int_to_ptr.vmem [resolvable:$true] %s68
      %74 = dma.hbm_to_vmem [thread:$0]  %s5, 1024, %s69, [#allocation5], 64, 64, 4
    $region25: #{_lambda_.1} parent=1 // pred_fallthru
      _
    // Predicated region
    $region26: #{_lambda_.1} parent=1 // pred_check
      _
    $region27: #{_lambda_.1} parent=1 // pred_check_branch
      %76 = sbr.rel (0) target = $region29
    $region28: #{_lambda_.1} parent=1 // pred_region
      _
    $region29: #{_lambda_.1} parent=1 // pred_fallthru
      _
    // Predicated region
    $region30: #{_lambda_.1} parent=1 // pred_check
      _
    $region31: #{_lambda_.1} parent=1 // pred_check_branch
      %78 = sbr.rel (0) target = $region33
    $region32: #{_lambda_.1} parent=1 // pred_region
      %s80 = ssub.s32 1024, 1024
      %81 = vsyncadd [#allocation8], %s80
      %s82 = sshll.u32 [#allocation7], 4
      %s83 = int_to_ptr.vmem [resolvable:$true] %s82
      %88 = dma.hbm_to_vmem [thread:$0]  %s7, 1024, %s83, [#allocation8], 64, 64, 4
    $region33: #{_lambda_.1} parent=1 // pred_fallthru
      _
    // Predicated region
    $region34: #{_lambda_.1} parent=1 // pred_check
      _
    $region35: #{_lambda_.1} parent=1 // pred_check_branch
      %90 = sbr.rel (0) target = $region37
    $region36: #{_lambda_.1} parent=1 // pred_region
      _
    $region37: #{_lambda_.1} parent=1 // pred_fallthru
      _
    // Predicated region
    $region38: #{_lambda_.1} parent=1 // pred_check
      _
    $region39: #{_lambda_.1} parent=1 // pred_check_branch
      %92 = sbr.rel (0) target = $region41
    $region40: #{_lambda_.1} parent=1 // pred_region
      %s94 = ssub.s32 1024, 1024
      %95 = vsyncadd [#allocation8], %s94
      %s96 = sshll.u32 [#allocation9], 4
      %s97 = int_to_ptr.vmem [resolvable:$true] %s96
      %102 = dma.hbm_to_vmem [thread:$0]  %s9, 1024, %s97, [#allocation8], 64, 64, 4
    $region41: #{_lambda_.1} parent=1 // pred_fallthru
      _
    // Predicated region
    $region42: #{_lambda_.1} parent=1 // pred_check
      _
    $region43: #{_lambda_.1} parent=1 // pred_check_branch
      %104 = sbr.rel (0) target = $region45
    $region44: #{_lambda_.1} parent=1 // pred_region
      _
    $region45: #{_lambda_.1} parent=1 // pred_fallthru
      _
    // Predicated region
    $region46: #{_lambda_.1} parent=1 // pred_check
      _
    $region47: #{_lambda_.1} parent=1 // pred_check_branch
      %106 = sbr.rel (0) target = $region49
    $region48: #{_lambda_.1} parent=1 // pred_region
      %s108 = ssub.s32 1024, 1024
      %109 = vsyncadd [#allocation11], %s108
      %s110 = sshll.u32 [#allocation10], 4
      %s111 = int_to_ptr.vmem [resolvable:$true] %s110
      %116 = dma.hbm_to_vmem [thread:$0]  %s11, 1024, %s111, [#allocation11], 64, 64, 4
    $region49: #{_lambda_.1} parent=1 // pred_fallthru
      _
    // Predicated region
    $region50: #{_lambda_.1} parent=1 // pred_check
      _
    $region51: #{_lambda_.1} parent=1 // pred_check_branch
      %118 = sbr.rel (0) target = $region53
    $region52: #{_lambda_.1} parent=1 // pred_region
      _
    $region53: #{_lambda_.1} parent=1 // pred_fallthru
      _
    // Predicated region
    $region54: #{_lambda_.1} parent=1 // pred_check
      _
    $region55: #{_lambda_.1} parent=1 // pred_check_branch
      %120 = sbr.rel (0) target = $region57
    $region56: #{_lambda_.1} parent=1 // pred_region
      %s122 = ssub.s32 1024, 1024
      %123 = vsyncadd [#allocation11], %s122
      %s124 = sshll.u32 [#allocation12], 4
      %s125 = int_to_ptr.vmem [resolvable:$true] %s124
      %130 = dma.hbm_to_vmem [thread:$0]  %s13, 1024, %s125, [#allocation11], 64, 64, 4
    $region57: #{_lambda_.1} parent=1 // pred_fallthru
      _
    // Predicated region
    $region58: #{_lambda_.1} parent=1 // pred_check
      _
    $region59: #{_lambda_.1} parent=1 // pred_check_branch
      %132 = sbr.rel (0) target = $region61
    $region60: #{_lambda_.1} parent=1 // pred_region
      %s134 = ssub.s32 1024, 1024
      %135 = vsyncadd [#allocation14], %s134
      %s136 = sshll.u32 [#allocation13], 4
      %s137 = int_to_ptr.vmem [resolvable:$true] %s136
      %142 = dma.hbm_to_vmem [thread:$0]  %s14, 1024, %s137, [#allocation14], 64, 64, 4
    $region61: #{_lambda_.1} parent=1 // pred_fallthru
      _
    // Predicated region
    $region62: #{_lambda_.1} parent=1 // pred_check
      _
    $region63: #{_lambda_.1} parent=1 // pred_check_branch
      %144 = sbr.rel (0) target = $region65
    $region64: #{_lambda_.1} parent=1 // pred_region
      _
    $region65: #{_lambda_.1} parent=1 // pred_fallthru
      _
    // Predicated region
    $region66: #{_lambda_.1} parent=1 // pred_check
      _
    $region67: #{_lambda_.1} parent=1 // pred_check_branch
      %146 = sbr.rel (0) target = $region69
    $region68: #{_lambda_.1} parent=1 // pred_region
      %s148 = ssub.s32 1024, 1024
      %149 = vsyncadd [#allocation14], %s148
      %s150 = sshll.u32 [#allocation15], 4
      %s151 = int_to_ptr.vmem [resolvable:$true] %s150
      %156 = dma.hbm_to_vmem [thread:$0]  %s16, 1024, %s151, [#allocation14], 64, 64, 4
    $region69: #{_lambda_.1} parent=1 // pred_fallthru
      _
    // Predicated region
    $region70: #{_lambda_.1} parent=1 // pred_check
      _
    $region71: #{_lambda_.1} parent=1 // pred_check_branch
      %158 = sbr.rel (0) target = $region73
    $region72: #{_lambda_.1} parent=1 // pred_region
      _
    $region73: #{_lambda_.1} parent=1 // pred_fallthru
      _
    // Predicated region
    $region74: #{_lambda_.1} parent=1 // pred_check
      _
    $region75: #{_lambda_.1} parent=1 // pred_check_branch
      %160 = sbr.rel (0) target = $region77
    $region76: #{_lambda_.1} parent=1 // pred_region
      %s162 = ssub.s32 1024, 1024
      %163 = vsyncadd [#allocation17], %s162
      %s164 = sshll.u32 [#allocation16], 4
      %s165 = int_to_ptr.vmem [resolvable:$true] %s164
      %170 = dma.hbm_to_vmem [thread:$0]  %s18, 1024, %s165, [#allocation17], 64, 64, 4
    $region77: #{_lambda_.1} parent=1 // pred_fallthru
      _
    // Predicated region
    $region78: #{_lambda_.1} parent=1 // pred_check
      _
    $region79: #{_lambda_.1} parent=1 // pred_check_branch
      %172 = sbr.rel (0) target = $region81
    $region80: #{_lambda_.1} parent=1 // pred_region
      _
    $region81: #{_lambda_.1} parent=1 // pred_fallthru
      _
    // Predicated region
    $region82: #{_lambda_.1} parent=1 // pred_check
      _
    $region83: #{_lambda_.1} parent=1 // pred_check_branch
      %174 = sbr.rel (0) target = $region85
    $region84: #{_lambda_.1} parent=1 // pred_region
      %175 = dma.done [#allocation3], 1024
    $region85: #{_lambda_.1} parent=1 // pred_fallthru
      _
    // Predicated region
    $region86: #{_lambda_.1} parent=1 // pred_check
      _
    $region87: #{_lambda_.1} parent=1 // pred_check_branch
      %177 = sbr.rel (0) target = $region89
    $region88: #{_lambda_.1} parent=1 // pred_region
      %178 = dma.done [#allocation5], 1024
    $region89: #{_lambda_.1} parent=1 // pred_fallthru
      _
    // Predicated region
    $region90: #{_lambda_.1} parent=1 // pred_check
      _
    $region91: #{_lambda_.1} parent=1 // pred_check_branch
      %180 = sbr.rel (0) target = $region93
    $region92: #{_lambda_.1} parent=1 // pred_region
      %181 = dma.done [#allocation5], 1024
    $region93: #{_lambda_.1} parent=1 // pred_fallthru
      _
    // Predicated region
    $region94: #{_lambda_.1} parent=1 // pred_check
      _
    $region95: #{_lambda_.1} parent=1 // pred_check_branch
      %183 = sbr.rel (0) target = $region97
    $region96: #{_lambda_.1} parent=1 // pred_region
      %184 = dma.done [#allocation8], 1024
    $region97: #{_lambda_.1} parent=1 // pred_fallthru
      _
    // Predicated region
    $region98: #{_lambda_.1} parent=1 // pred_check
      _
    $region99: #{_lambda_.1} parent=1 // pred_check_branch
      %186 = sbr.rel (0) target = $region101
    $region100: #{_lambda_.1} parent=1 // pred_region
      %187 = dma.done [#allocation8], 1024
    $region101: #{_lambda_.1} parent=1 // pred_fallthru
      _
    // Predicated region
    $region102: #{_lambda_.1} parent=1 // pred_check
      _
    $region103: #{_lambda_.1} parent=1 // pred_check_branch
      %189 = sbr.rel (0) target = $region105
    $region104: #{_lambda_.1} parent=1 // pred_region
      %190 = dma.done [#allocation11], 1024
    $region105: #{_lambda_.1} parent=1 // pred_fallthru
      _
    // Predicated region
    $region106: #{_lambda_.1} parent=1 // pred_check
      _
    $region107: #{_lambda_.1} parent=1 // pred_check_branch
      %192 = sbr.rel (0) target = $region109
    $region108: #{_lambda_.1} parent=1 // pred_region
      %193 = dma.done [#allocation11], 1024
    $region109: #{_lambda_.1} parent=1 // pred_fallthru
      _
    // Predicated region
    $region110: #{_lambda_.1} parent=1 // pred_check
      _
    $region111: #{_lambda_.1} parent=1 // pred_check_branch
      %195 = sbr.rel (0) target = $region113
    $region112: #{_lambda_.1} parent=1 // pred_region
      %196 = dma.done [#allocation14], 1024
    $region113: #{_lambda_.1} parent=1 // pred_fallthru
      _
    // Predicated region
    $region114: #{_lambda_.1} parent=1 // pred_check
      _
    $region115: #{_lambda_.1} parent=1 // pred_check_branch
      %198 = sbr.rel (0) target = $region117
    $region116: #{_lambda_.1} parent=1 // pred_region
      %199 = dma.done [#allocation14], 1024
    $region117: #{_lambda_.1} parent=1 // pred_fallthru
      _
    // Predicated region
    $region118: #{_lambda_.1} parent=1 // pred_check
      _
    $region119: #{_lambda_.1} parent=1 // pred_check_branch
      %201 = sbr.rel (0) target = $region121
    $region120: #{_lambda_.1} parent=1 // pred_region
      %202 = dma.done [#allocation17], 1024
    $region121: #{_lambda_.1} parent=1 // pred_fallthru
      _
    %v204 = vld [vmem:[%s0] sm:$0xf]
    %v205 = vld [vmem:[#allocation2] sm:$0xf]
    %v206 = vld [vmem:[#allocation2 + $0x4] sm:$0xf]
    %v207 = vld [vmem:[#allocation2 + $0x8] sm:$0xf]
    %v208 = vld [vmem:[#allocation2 + $0xc] sm:$0xf]
    %v209 = vld [vmem:[#allocation2 + $0x10] sm:$0xf]
    %v210 = vld [vmem:[#allocation2 + $0x14] sm:$0xf]
    %v211 = vld [vmem:[#allocation2 + $0x18] sm:$0xf]
    %v212 = vld [vmem:[#allocation2 + $0x1c] sm:$0xf]
    %v213 = vld [vmem:[#allocation2 + $0x20] sm:$0xf]
    %v214 = vld [vmem:[#allocation2 + $0x24] sm:$0xf]
    %v215 = vld [vmem:[#allocation2 + $0x28] sm:$0xf]
    %v216 = vld [vmem:[#allocation2 + $0x2c] sm:$0xf]
    %v217 = vld [vmem:[#allocation2 + $0x30] sm:$0xf]
    %v218 = vld [vmem:[#allocation2 + $0x34] sm:$0xf]
    %v219 = vld [vmem:[#allocation2 + $0x38] sm:$0xf]
    %v220 = vld [vmem:[#allocation2 + $0x3c] sm:$0xf]
    %v221 = vld [vmem:[%s2] sm:$0x1]
    %v223 = vlaneseq
    %v224 = vshrl.u32 %v223, 7
    %v225 = vsub.s32 0, %v224
    %v226 = vrot.slane %v221, %v225
    %v244 = vunpack.c.l.b16 %v205
    %v245 = vunpack.c.l.b16 %v206
    %v246 = vunpack.c.l.b16 %v207
    %v247 = vunpack.c.l.b16 %v208
    %v248 = vunpack.c.l.b16 %v209
    %v249 = vunpack.c.l.b16 %v210
    %v250 = vunpack.c.l.b16 %v211
    %v251 = vunpack.c.l.b16 %v212
    %v252 = vunpack.c.l.b16 %v213
    %v253 = vunpack.c.l.b16 %v214
    %v254 = vunpack.c.l.b16 %v215
    %v255 = vunpack.c.l.b16 %v216
    %v256 = vunpack.c.l.b16 %v217
    %v257 = vunpack.c.l.b16 %v218
    %v258 = vunpack.c.l.b16 %v219
    %v259 = vunpack.c.l.b16 %v220
    %v260 = vpack.c.b16 %v245, %v244
    %v261 = vpack.c.b16 %v247, %v246
    %v262 = vpack.c.b16 %v249, %v248
    %v263 = vpack.c.b16 %v251, %v250
    %v264 = vpack.c.b16 %v253, %v252
    %v265 = vpack.c.b16 %v255, %v254
    %v266 = vpack.c.b16 %v257, %v256
    %v267 = vpack.c.b16 %v259, %v258
    %276 = vmatprep.subr.bf16.mxu0 0
    %277 = vmatpush1.bf16.msra.mxu0 %v267
    %278 = vmatprep.subr.bf16.mxu0 0
    %279 = vmatpush1.bf16.msra.mxu0 %v266
    %280 = vmatprep.subr.bf16.mxu0 0
    %281 = vmatpush1.bf16.msra.mxu0 %v265
    %282 = vmatprep.subr.bf16.mxu0 0
    %283 = vmatpush1.bf16.msra.mxu0 %v264
    %284 = vmatprep.subr.bf16.mxu0 0
    %285 = vmatpush1.bf16.msra.mxu0 %v263
    %286 = vmatprep.subr.bf16.mxu0 0
    %287 = vmatpush1.bf16.msra.mxu0 %v262
    %288 = vmatprep.subr.bf16.mxu0 0
    %289 = vmatpush1.bf16.msra.mxu0 %v261
    %290 = vmatprep.subr.bf16.mxu0 0
    %291 = vmatpush1.bf16.msra.mxu0 %v260
    %292 = vmatprep.subr.bf16.mxu0 0
    %293 = vmatpush2.bf16.msra.mxu0 0
    %294 = vmatprep.subr.bf16.mxu0 0
    %295 = vmatpush2.bf16.msra.mxu0 0
    %296 = vmatprep.subr.bf16.mxu0 0
    %297 = vmatpush2.bf16.msra.mxu0 0
    %298 = vmatprep.subr.bf16.mxu0 0
    %299 = vmatpush2.bf16.msra.mxu0 0
    %300 = vmatprep.subr.bf16.mxu0 0
    %301 = vmatpush2.bf16.msra.mxu0 0
    %302 = vmatprep.subr.bf16.mxu0 0
    %303 = vmatpush2.bf16.msra.mxu0 0
    %304 = vmatprep.subr.bf16.mxu0 0
    %305 = vmatpush2.bf16.msra.mxu0 0
    %306 = vmatprep.subr.bf16.mxu0 0
    %307 = vmatpush2.bf16.msra.mxu0 0
    %308 = vmatprep.mubr.bf16.mxu0 0
    %309 = vmatmul.mubr.bf16.gmra.mxu0 %v204
    %v310 = vpop.f32.mrf.mxu0
    %v311 = vadd.f32 %v226, %v310
    %v312 = vpop.f32.mrf.mxu0
    %v313 = vpop.f32.mrf.mxu0
    %v314 = vpop.f32.mrf.mxu0
    %315 = vdwg.mxu0
    %v316 = vpack.c.bf16 %v311, %v311
    %v317 = vmax.bf16 %v316, 0
    %v318 = vld [vmem:[#allocation4] sm:$0xf]
    %v319 = vld [vmem:[#allocation4 + $0x4] sm:$0xf]
    %v320 = vld [vmem:[#allocation4 + $0x8] sm:$0xf]
    %v321 = vld [vmem:[#allocation4 + $0xc] sm:$0xf]
    %v322 = vld [vmem:[#allocation4 + $0x10] sm:$0xf]
    %v323 = vld [vmem:[#allocation4 + $0x14] sm:$0xf]
    %v324 = vld [vmem:[#allocation4 + $0x18] sm:$0xf]
    %v325 = vld [vmem:[#allocation4 + $0x1c] sm:$0xf]
    %v326 = vld [vmem:[#allocation4 + $0x20] sm:$0xf]
    %v327 = vld [vmem:[#allocation4 + $0x24] sm:$0xf]
    %v328 = vld [vmem:[#allocation4 + $0x28] sm:$0xf]
    %v329 = vld [vmem:[#allocation4 + $0x2c] sm:$0xf]
    %v330 = vld [vmem:[#allocation4 + $0x30] sm:$0xf]
    %v331 = vld [vmem:[#allocation4 + $0x34] sm:$0xf]
    %v332 = vld [vmem:[#allocation4 + $0x38] sm:$0xf]
    %v333 = vld [vmem:[#allocation4 + $0x3c] sm:$0xf]
    %v334 = vld [vmem:[%s4] sm:$0x1]
    %v336 = vlaneseq
    %v337 = vshrl.u32 %v336, 7
    %v338 = vsub.s32 0, %v337
    %v339 = vrot.slane %v334, %v338
    %v357 = vunpack.c.l.b16 %v318
    %v358 = vunpack.c.l.b16 %v319
    %v359 = vunpack.c.l.b16 %v320
    %v360 = vunpack.c.l.b16 %v321
    %v361 = vunpack.c.l.b16 %v322
    %v362 = vunpack.c.l.b16 %v323
    %v363 = vunpack.c.l.b16 %v324
    %v364 = vunpack.c.l.b16 %v325
    %v365 = vunpack.c.l.b16 %v326
    %v366 = vunpack.c.l.b16 %v327
    %v367 = vunpack.c.l.b16 %v328
    %v368 = vunpack.c.l.b16 %v329
    %v369 = vunpack.c.l.b16 %v330
    %v370 = vunpack.c.l.b16 %v331
    %v371 = vunpack.c.l.b16 %v332
    %v372 = vunpack.c.l.b16 %v333
    %v373 = vpack.c.b16 %v358, %v357
    %v374 = vpack.c.b16 %v360, %v359
    %v375 = vpack.c.b16 %v362, %v361
    %v376 = vpack.c.b16 %v364, %v363
    %v377 = vpack.c.b16 %v366, %v365
    %v378 = vpack.c.b16 %v368, %v367
    %v379 = vpack.c.b16 %v370, %v369
    %v380 = vpack.c.b16 %v372, %v371
    %389 = vmatprep.subr.bf16.mxu0 0
    %390 = vmatpush1.bf16.msra.mxu0 %v380
    %391 = vmatprep.subr.bf16.mxu0 0
    %392 = vmatpush1.bf16.msra.mxu0 %v379
    %393 = vmatprep.subr.bf16.mxu0 0
    %394 = vmatpush1.bf16.msra.mxu0 %v378
    %395 = vmatprep.subr.bf16.mxu0 0
    %396 = vmatpush1.bf16.msra.mxu0 %v377
    %397 = vmatprep.subr.bf16.mxu0 0
    %398 = vmatpush1.bf16.msra.mxu0 %v376
    %399 = vmatprep.subr.bf16.mxu0 0
    %400 = vmatpush1.bf16.msra.mxu0 %v375
    %401 = vmatprep.subr.bf16.mxu0 0
    %402 = vmatpush1.bf16.msra.mxu0 %v374
    %403 = vmatprep.subr.bf16.mxu0 0
    %404 = vmatpush1.bf16.msra.mxu0 %v373
    %405 = vmatprep.subr.bf16.mxu0 0
    %406 = vmatpush2.bf16.msra.mxu0 0
    %407 = vmatprep.subr.bf16.mxu0 0
    %408 = vmatpush2.bf16.msra.mxu0 0
    %409 = vmatprep.subr.bf16.mxu0 0
    %410 = vmatpush2.bf16.msra.mxu0 0
    %411 = vmatprep.subr.bf16.mxu0 0
    %412 = vmatpush2.bf16.msra.mxu0 0
    %413 = vmatprep.subr.bf16.mxu0 0
    %414 = vmatpush2.bf16.msra.mxu0 0
    %415 = vmatprep.subr.bf16.mxu0 0
    %416 = vmatpush2.bf16.msra.mxu0 0
    %417 = vmatprep.subr.bf16.mxu0 0
    %418 = vmatpush2.bf16.msra.mxu0 0
    %419 = vmatprep.subr.bf16.mxu0 0
    %420 = vmatpush2.bf16.msra.mxu0 0
    %421 = vmatprep.mubr.bf16.mxu0 0
    %422 = vmatmul.mubr.bf16.gmra.mxu0 %v317
    %v423 = vpop.f32.mrf.mxu0
    %v424 = vadd.f32 %v339, %v423
    %v425 = vpop.f32.mrf.mxu0
    %v426 = vpop.f32.mrf.mxu0
    %v427 = vpop.f32.mrf.mxu0
    %428 = vdwg.mxu0
    %v429 = vpack.c.bf16 %v424, %v424
    %v430 = vmax.bf16 %v429, 0
    %v431 = vld [vmem:[#allocation6] sm:$0xf]
    %v432 = vld [vmem:[#allocation6 + $0x4] sm:$0xf]
    %v433 = vld [vmem:[#allocation6 + $0x8] sm:$0xf]
    %v434 = vld [vmem:[#allocation6 + $0xc] sm:$0xf]
    %v435 = vld [vmem:[#allocation6 + $0x10] sm:$0xf]
    %v436 = vld [vmem:[#allocation6 + $0x14] sm:$0xf]
    %v437 = vld [vmem:[#allocation6 + $0x18] sm:$0xf]
    %v438 = vld [vmem:[#allocation6 + $0x1c] sm:$0xf]
    %v439 = vld [vmem:[#allocation6 + $0x20] sm:$0xf]
    %v440 = vld [vmem:[#allocation6 + $0x24] sm:$0xf]
    %v441 = vld [vmem:[#allocation6 + $0x28] sm:$0xf]
    %v442 = vld [vmem:[#allocation6 + $0x2c] sm:$0xf]
    %v443 = vld [vmem:[#allocation6 + $0x30] sm:$0xf]
    %v444 = vld [vmem:[#allocation6 + $0x34] sm:$0xf]
    %v445 = vld [vmem:[#allocation6 + $0x38] sm:$0xf]
    %v446 = vld [vmem:[#allocation6 + $0x3c] sm:$0xf]
    %v447 = vld [vmem:[%s6] sm:$0x1]
    %v449 = vlaneseq
    %v450 = vshrl.u32 %v449, 7
    %v451 = vsub.s32 0, %v450
    %v452 = vrot.slane %v447, %v451
    %v470 = vunpack.c.l.b16 %v431
    %v471 = vunpack.c.l.b16 %v432
    %v472 = vunpack.c.l.b16 %v433
    %v473 = vunpack.c.l.b16 %v434
    %v474 = vunpack.c.l.b16 %v435
    %v475 = vunpack.c.l.b16 %v436
    %v476 = vunpack.c.l.b16 %v437
    %v477 = vunpack.c.l.b16 %v438
    %v478 = vunpack.c.l.b16 %v439
    %v479 = vunpack.c.l.b16 %v440
    %v480 = vunpack.c.l.b16 %v441
    %v481 = vunpack.c.l.b16 %v442
    %v482 = vunpack.c.l.b16 %v443
    %v483 = vunpack.c.l.b16 %v444
    %v484 = vunpack.c.l.b16 %v445
    %v485 = vunpack.c.l.b16 %v446
    %v486 = vpack.c.b16 %v471, %v470
    %v487 = vpack.c.b16 %v473, %v472
    %v488 = vpack.c.b16 %v475, %v474
    %v489 = vpack.c.b16 %v477, %v476
    %v490 = vpack.c.b16 %v479, %v478
    %v491 = vpack.c.b16 %v481, %v480
    %v492 = vpack.c.b16 %v483, %v482
    %v493 = vpack.c.b16 %v485, %v484
    %502 = vmatprep.subr.bf16.mxu0 0
    %503 = vmatpush1.bf16.msra.mxu0 %v493
    %504 = vmatprep.subr.bf16.mxu0 0
    %505 = vmatpush1.bf16.msra.mxu0 %v492
    %506 = vmatprep.subr.bf16.mxu0 0
    %507 = vmatpush1.bf16.msra.mxu0 %v491
    %508 = vmatprep.subr.bf16.mxu0 0
    %509 = vmatpush1.bf16.msra.mxu0 %v490
    %510 = vmatprep.subr.bf16.mxu0 0
    %511 = vmatpush1.bf16.msra.mxu0 %v489
    %512 = vmatprep.subr.bf16.mxu0 0
    %513 = vmatpush1.bf16.msra.mxu0 %v488
    %514 = vmatprep.subr.bf16.mxu0 0
    %515 = vmatpush1.bf16.msra.mxu0 %v487
    %516 = vmatprep.subr.bf16.mxu0 0
    %517 = vmatpush1.bf16.msra.mxu0 %v486
    %518 = vmatprep.subr.bf16.mxu0 0
    %519 = vmatpush2.bf16.msra.mxu0 0
    %520 = vmatprep.subr.bf16.mxu0 0
    %521 = vmatpush2.bf16.msra.mxu0 0
    %522 = vmatprep.subr.bf16.mxu0 0
    %523 = vmatpush2.bf16.msra.mxu0 0
    %524 = vmatprep.subr.bf16.mxu0 0
    %525 = vmatpush2.bf16.msra.mxu0 0
    %526 = vmatprep.subr.bf16.mxu0 0
    %527 = vmatpush2.bf16.msra.mxu0 0
    %528 = vmatprep.subr.bf16.mxu0 0
    %529 = vmatpush2.bf16.msra.mxu0 0
    %530 = vmatprep.subr.bf16.mxu0 0
    %531 = vmatpush2.bf16.msra.mxu0 0
    %532 = vmatprep.subr.bf16.mxu0 0
    %533 = vmatpush2.bf16.msra.mxu0 0
    %534 = vmatprep.mubr.bf16.mxu0 0
    %535 = vmatmul.mubr.bf16.gmra.mxu0 %v430
    %v536 = vpop.f32.mrf.mxu0
    %v537 = vadd.f32 %v452, %v536
    %v538 = vpop.f32.mrf.mxu0
    %v539 = vpop.f32.mrf.mxu0
    %v540 = vpop.f32.mrf.mxu0
    %541 = vdwg.mxu0
    %v542 = vpack.c.bf16 %v537, %v537
    %v543 = vld [vmem:[#allocation7] sm:$0xf]
    %v544 = vld [vmem:[#allocation7 + $0x4] sm:$0xf]
    %v545 = vld [vmem:[#allocation7 + $0x8] sm:$0xf]
    %v546 = vld [vmem:[#allocation7 + $0xc] sm:$0xf]
    %v547 = vld [vmem:[#allocation7 + $0x10] sm:$0xf]
    %v548 = vld [vmem:[#allocation7 + $0x14] sm:$0xf]
    %v549 = vld [vmem:[#allocation7 + $0x18] sm:$0xf]
    %v550 = vld [vmem:[#allocation7 + $0x1c] sm:$0xf]
    %v551 = vld [vmem:[#allocation7 + $0x20] sm:$0xf]
    %v552 = vld [vmem:[#allocation7 + $0x24] sm:$0xf]
    %v553 = vld [vmem:[#allocation7 + $0x28] sm:$0xf]
    %v554 = vld [vmem:[#allocation7 + $0x2c] sm:$0xf]
    %v555 = vld [vmem:[#allocation7 + $0x30] sm:$0xf]
    %v556 = vld [vmem:[#allocation7 + $0x34] sm:$0xf]
    %v557 = vld [vmem:[#allocation7 + $0x38] sm:$0xf]
    %v558 = vld [vmem:[#allocation7 + $0x3c] sm:$0xf]
    %v559 = vld [vmem:[%s8] sm:$0x1]
    %v561 = vlaneseq
    %v562 = vshrl.u32 %v561, 7
    %v563 = vsub.s32 0, %v562
    %v564 = vrot.slane %v559, %v563
    %v582 = vunpack.c.l.b16 %v543
    %v583 = vunpack.c.l.b16 %v544
    %v584 = vunpack.c.l.b16 %v545
    %v585 = vunpack.c.l.b16 %v546
    %v586 = vunpack.c.l.b16 %v547
    %v587 = vunpack.c.l.b16 %v548
    %v588 = vunpack.c.l.b16 %v549
    %v589 = vunpack.c.l.b16 %v550
    %v590 = vunpack.c.l.b16 %v551
    %v591 = vunpack.c.l.b16 %v552
    %v592 = vunpack.c.l.b16 %v553
    %v593 = vunpack.c.l.b16 %v554
    %v594 = vunpack.c.l.b16 %v555
    %v595 = vunpack.c.l.b16 %v556
    %v596 = vunpack.c.l.b16 %v557
    %v597 = vunpack.c.l.b16 %v558
    %v598 = vpack.c.b16 %v583, %v582
    %v599 = vpack.c.b16 %v585, %v584
    %v600 = vpack.c.b16 %v587, %v586
    %v601 = vpack.c.b16 %v589, %v588
    %v602 = vpack.c.b16 %v591, %v590
    %v603 = vpack.c.b16 %v593, %v592
    %v604 = vpack.c.b16 %v595, %v594
    %v605 = vpack.c.b16 %v597, %v596
    %614 = vmatprep.subr.bf16.mxu0 0
    %615 = vmatpush1.bf16.msra.mxu0 %v605
    %616 = vmatprep.subr.bf16.mxu0 0
    %617 = vmatpush1.bf16.msra.mxu0 %v604
    %618 = vmatprep.subr.bf16.mxu0 0
    %619 = vmatpush1.bf16.msra.mxu0 %v603
    %620 = vmatprep.subr.bf16.mxu0 0
    %621 = vmatpush1.bf16.msra.mxu0 %v602
    %622 = vmatprep.subr.bf16.mxu0 0
    %623 = vmatpush1.bf16.msra.mxu0 %v601
    %624 = vmatprep.subr.bf16.mxu0 0
    %625 = vmatpush1.bf16.msra.mxu0 %v600
    %626 = vmatprep.subr.bf16.mxu0 0
    %627 = vmatpush1.bf16.msra.mxu0 %v599
    %628 = vmatprep.subr.bf16.mxu0 0
    %629 = vmatpush1.bf16.msra.mxu0 %v598
    %630 = vmatprep.subr.bf16.mxu0 0
    %631 = vmatpush2.bf16.msra.mxu0 0
    %632 = vmatprep.subr.bf16.mxu0 0
    %633 = vmatpush2.bf16.msra.mxu0 0
    %634 = vmatprep.subr.bf16.mxu0 0
    %635 = vmatpush2.bf16.msra.mxu0 0
    %636 = vmatprep.subr.bf16.mxu0 0
    %637 = vmatpush2.bf16.msra.mxu0 0
    %638 = vmatprep.subr.bf16.mxu0 0
    %639 = vmatpush2.bf16.msra.mxu0 0
    %640 = vmatprep.subr.bf16.mxu0 0
    %641 = vmatpush2.bf16.msra.mxu0 0
    %642 = vmatprep.subr.bf16.mxu0 0
    %643 = vmatpush2.bf16.msra.mxu0 0
    %644 = vmatprep.subr.bf16.mxu0 0
    %645 = vmatpush2.bf16.msra.mxu0 0
    %646 = vmatprep.mubr.bf16.mxu0 0
    %647 = vmatmul.mubr.bf16.gmra.mxu0 %v542
    %v648 = vpop.f32.mrf.mxu0
    %v649 = vadd.f32 %v564, %v648
    %v650 = vpop.f32.mrf.mxu0
    %v651 = vpop.f32.mrf.mxu0
    %v652 = vpop.f32.mrf.mxu0
    %653 = vdwg.mxu0
    %v654 = vpack.c.bf16 %v649, %v649
    %v655 = vmax.bf16 %v654, 0
    %v656 = vld [vmem:[#allocation9] sm:$0xf]
    %v657 = vld [vmem:[#allocation9 + $0x4] sm:$0xf]
    %v658 = vld [vmem:[#allocation9 + $0x8] sm:$0xf]
    %v659 = vld [vmem:[#allocation9 + $0xc] sm:$0xf]
    %v660 = vld [vmem:[#allocation9 + $0x10] sm:$0xf]
    %v661 = vld [vmem:[#allocation9 + $0x14] sm:$0xf]
    %v662 = vld [vmem:[#allocation9 + $0x18] sm:$0xf]
    %v663 = vld [vmem:[#allocation9 + $0x1c] sm:$0xf]
    %v664 = vld [vmem:[#allocation9 + $0x20] sm:$0xf]
    %v665 = vld [vmem:[#allocation9 + $0x24] sm:$0xf]
    %v666 = vld [vmem:[#allocation9 + $0x28] sm:$0xf]
    %v667 = vld [vmem:[#allocation9 + $0x2c] sm:$0xf]
    %v668 = vld [vmem:[#allocation9 + $0x30] sm:$0xf]
    %v669 = vld [vmem:[#allocation9 + $0x34] sm:$0xf]
    %v670 = vld [vmem:[#allocation9 + $0x38] sm:$0xf]
    %v671 = vld [vmem:[#allocation9 + $0x3c] sm:$0xf]
    %v672 = vld [vmem:[%s10] sm:$0x1]
    %v674 = vlaneseq
    %v675 = vshrl.u32 %v674, 7
    %v676 = vsub.s32 0, %v675
    %v677 = vrot.slane %v672, %v676
    %v695 = vunpack.c.l.b16 %v656
    %v696 = vunpack.c.l.b16 %v657
    %v697 = vunpack.c.l.b16 %v658
    %v698 = vunpack.c.l.b16 %v659
    %v699 = vunpack.c.l.b16 %v660
    %v700 = vunpack.c.l.b16 %v661
    %v701 = vunpack.c.l.b16 %v662
    %v702 = vunpack.c.l.b16 %v663
    %v703 = vunpack.c.l.b16 %v664
    %v704 = vunpack.c.l.b16 %v665
    %v705 = vunpack.c.l.b16 %v666
    %v706 = vunpack.c.l.b16 %v667
    %v707 = vunpack.c.l.b16 %v668
    %v708 = vunpack.c.l.b16 %v669
    %v709 = vunpack.c.l.b16 %v670
    %v710 = vunpack.c.l.b16 %v671
    %v711 = vpack.c.b16 %v696, %v695
    %v712 = vpack.c.b16 %v698, %v697
    %v713 = vpack.c.b16 %v700, %v699
    %v714 = vpack.c.b16 %v702, %v701
    %v715 = vpack.c.b16 %v704, %v703
    %v716 = vpack.c.b16 %v706, %v705
    %v717 = vpack.c.b16 %v708, %v707
    %v718 = vpack.c.b16 %v710, %v709
    %727 = vmatprep.subr.bf16.mxu0 0
    %728 = vmatpush1.bf16.msra.mxu0 %v718
    %729 = vmatprep.subr.bf16.mxu0 0
    %730 = vmatpush1.bf16.msra.mxu0 %v717
    %731 = vmatprep.subr.bf16.mxu0 0
    %732 = vmatpush1.bf16.msra.mxu0 %v716
    %733 = vmatprep.subr.bf16.mxu0 0
    %734 = vmatpush1.bf16.msra.mxu0 %v715
    %735 = vmatprep.subr.bf16.mxu0 0
    %736 = vmatpush1.bf16.msra.mxu0 %v714
    %737 = vmatprep.subr.bf16.mxu0 0
    %738 = vmatpush1.bf16.msra.mxu0 %v713
    %739 = vmatprep.subr.bf16.mxu0 0
    %740 = vmatpush1.bf16.msra.mxu0 %v712
    %741 = vmatprep.subr.bf16.mxu0 0
    %742 = vmatpush1.bf16.msra.mxu0 %v711
    %743 = vmatprep.subr.bf16.mxu0 0
    %744 = vmatpush2.bf16.msra.mxu0 0
    %745 = vmatprep.subr.bf16.mxu0 0
    %746 = vmatpush2.bf16.msra.mxu0 0
    %747 = vmatprep.subr.bf16.mxu0 0
    %748 = vmatpush2.bf16.msra.mxu0 0
    %749 = vmatprep.subr.bf16.mxu0 0
    %750 = vmatpush2.bf16.msra.mxu0 0
    %751 = vmatprep.subr.bf16.mxu0 0
    %752 = vmatpush2.bf16.msra.mxu0 0
    %753 = vmatprep.subr.bf16.mxu0 0
    %754 = vmatpush2.bf16.msra.mxu0 0
    %755 = vmatprep.subr.bf16.mxu0 0
    %756 = vmatpush2.bf16.msra.mxu0 0
    %757 = vmatprep.subr.bf16.mxu0 0
    %758 = vmatpush2.bf16.msra.mxu0 0
    %759 = vmatprep.mubr.bf16.mxu0 0
    %760 = vmatmul.mubr.bf16.gmra.mxu0 %v655
    %v761 = vpop.f32.mrf.mxu0
    %v762 = vadd.f32 %v677, %v761
    %v763 = vpop.f32.mrf.mxu0
    %v764 = vpop.f32.mrf.mxu0
    %v765 = vpop.f32.mrf.mxu0
    %766 = vdwg.mxu0
    %v767 = vpack.c.bf16 %v762, %v762
    %v768 = vmax.bf16 %v767, 0
    %v769 = vld [vmem:[#allocation10] sm:$0xf]
    %v770 = vld [vmem:[#allocation10 + $0x4] sm:$0xf]
    %v771 = vld [vmem:[#allocation10 + $0x8] sm:$0xf]
    %v772 = vld [vmem:[#allocation10 + $0xc] sm:$0xf]
    %v773 = vld [vmem:[#allocation10 + $0x10] sm:$0xf]
    %v774 = vld [vmem:[#allocation10 + $0x14] sm:$0xf]
    %v775 = vld [vmem:[#allocation10 + $0x18] sm:$0xf]
    %v776 = vld [vmem:[#allocation10 + $0x1c] sm:$0xf]
    %v777 = vld [vmem:[#allocation10 + $0x20] sm:$0xf]
    %v778 = vld [vmem:[#allocation10 + $0x24] sm:$0xf]
    %v779 = vld [vmem:[#allocation10 + $0x28] sm:$0xf]
    %v780 = vld [vmem:[#allocation10 + $0x2c] sm:$0xf]
    %v781 = vld [vmem:[#allocation10 + $0x30] sm:$0xf]
    %v782 = vld [vmem:[#allocation10 + $0x34] sm:$0xf]
    %v783 = vld [vmem:[#allocation10 + $0x38] sm:$0xf]
    %v784 = vld [vmem:[#allocation10 + $0x3c] sm:$0xf]
    %v785 = vld [vmem:[%s12] sm:$0x1]
    %v787 = vlaneseq
    %v788 = vshrl.u32 %v787, 7
    %v789 = vsub.s32 0, %v788
    %v790 = vrot.slane %v785, %v789
    %v808 = vunpack.c.l.b16 %v769
    %v809 = vunpack.c.l.b16 %v770
    %v810 = vunpack.c.l.b16 %v771
    %v811 = vunpack.c.l.b16 %v772
    %v812 = vunpack.c.l.b16 %v773
    %v813 = vunpack.c.l.b16 %v774
    %v814 = vunpack.c.l.b16 %v775
    %v815 = vunpack.c.l.b16 %v776
    %v816 = vunpack.c.l.b16 %v777
    %v817 = vunpack.c.l.b16 %v778
    %v818 = vunpack.c.l.b16 %v779
    %v819 = vunpack.c.l.b16 %v780
    %v820 = vunpack.c.l.b16 %v781
    %v821 = vunpack.c.l.b16 %v782
    %v822 = vunpack.c.l.b16 %v783
    %v823 = vunpack.c.l.b16 %v784
    %v824 = vpack.c.b16 %v809, %v808
    %v825 = vpack.c.b16 %v811, %v810
    %v826 = vpack.c.b16 %v813, %v812
    %v827 = vpack.c.b16 %v815, %v814
    %v828 = vpack.c.b16 %v817, %v816
    %v829 = vpack.c.b16 %v819, %v818
    %v830 = vpack.c.b16 %v821, %v820
    %v831 = vpack.c.b16 %v823, %v822
    %840 = vmatprep.subr.bf16.mxu0 0
    %841 = vmatpush1.bf16.msra.mxu0 %v831
    %842 = vmatprep.subr.bf16.mxu0 0
    %843 = vmatpush1.bf16.msra.mxu0 %v830
    %844 = vmatprep.subr.bf16.mxu0 0
    %845 = vmatpush1.bf16.msra.mxu0 %v829
    %846 = vmatprep.subr.bf16.mxu0 0
    %847 = vmatpush1.bf16.msra.mxu0 %v828
    %848 = vmatprep.subr.bf16.mxu0 0
    %849 = vmatpush1.bf16.msra.mxu0 %v827
    %850 = vmatprep.subr.bf16.mxu0 0
    %851 = vmatpush1.bf16.msra.mxu0 %v826
    %852 = vmatprep.subr.bf16.mxu0 0
    %853 = vmatpush1.bf16.msra.mxu0 %v825
    %854 = vmatprep.subr.bf16.mxu0 0
    %855 = vmatpush1.bf16.msra.mxu0 %v824
    %856 = vmatprep.subr.bf16.mxu0 0
    %857 = vmatpush2.bf16.msra.mxu0 0
    %858 = vmatprep.subr.bf16.mxu0 0
    %859 = vmatpush2.bf16.msra.mxu0 0
    %860 = vmatprep.subr.bf16.mxu0 0
    %861 = vmatpush2.bf16.msra.mxu0 0
    %862 = vmatprep.subr.bf16.mxu0 0
    %863 = vmatpush2.bf16.msra.mxu0 0
    %864 = vmatprep.subr.bf16.mxu0 0
    %865 = vmatpush2.bf16.msra.mxu0 0
    %866 = vmatprep.subr.bf16.mxu0 0
    %867 = vmatpush2.bf16.msra.mxu0 0
    %868 = vmatprep.subr.bf16.mxu0 0
    %869 = vmatpush2.bf16.msra.mxu0 0
    %870 = vmatprep.subr.bf16.mxu0 0
    %871 = vmatpush2.bf16.msra.mxu0 0
    %872 = vmatprep.mubr.bf16.mxu0 0
    %873 = vmatmul.mubr.bf16.gmra.mxu0 %v768
    %v874 = vpop.f32.mrf.mxu0
    %v875 = vadd.f32 %v790, %v874
    %v876 = vpop.f32.mrf.mxu0
    %v877 = vpop.f32.mrf.mxu0
    %v878 = vpop.f32.mrf.mxu0
    %879 = vdwg.mxu0
    %880 = vst [vmem:[%s21] sm:$0xff] %v875
    %v881 = vpack.c.bf16 %v875, %v875
    %v882 = vld [vmem:[#allocation12] sm:$0xf]
    %v883 = vld [vmem:[#allocation12 + $0x4] sm:$0xf]
    %v884 = vld [vmem:[#allocation12 + $0x8] sm:$0xf]
    %v885 = vld [vmem:[#allocation12 + $0xc] sm:$0xf]
    %v886 = vld [vmem:[#allocation12 + $0x10] sm:$0xf]
    %v887 = vld [vmem:[#allocation12 + $0x14] sm:$0xf]
    %v888 = vld [vmem:[#allocation12 + $0x18] sm:$0xf]
    %v889 = vld [vmem:[#allocation12 + $0x1c] sm:$0xf]
    %v890 = vld [vmem:[#allocation12 + $0x20] sm:$0xf]
    %v891 = vld [vmem:[#allocation12 + $0x24] sm:$0xf]
    %v892 = vld [vmem:[#allocation12 + $0x28] sm:$0xf]
    %v893 = vld [vmem:[#allocation12 + $0x2c] sm:$0xf]
    %v894 = vld [vmem:[#allocation12 + $0x30] sm:$0xf]
    %v895 = vld [vmem:[#allocation12 + $0x34] sm:$0xf]
    %v896 = vld [vmem:[#allocation12 + $0x38] sm:$0xf]
    %v897 = vld [vmem:[#allocation12 + $0x3c] sm:$0xf]
    %v898 = vld [vmem:[#allocation13] sm:$0xf]
    %v899 = vld [vmem:[#allocation13 + $0x4] sm:$0xf]
    %v900 = vld [vmem:[#allocation13 + $0x8] sm:$0xf]
    %v901 = vld [vmem:[#allocation13 + $0xc] sm:$0xf]
    %v902 = vld [vmem:[#allocation13 + $0x10] sm:$0xf]
    %v903 = vld [vmem:[#allocation13 + $0x14] sm:$0xf]
    %v904 = vld [vmem:[#allocation13 + $0x18] sm:$0xf]
    %v905 = vld [vmem:[#allocation13 + $0x1c] sm:$0xf]
    %v906 = vld [vmem:[#allocation13 + $0x20] sm:$0xf]
    %v907 = vld [vmem:[#allocation13 + $0x24] sm:$0xf]
    %v908 = vld [vmem:[#allocation13 + $0x28] sm:$0xf]
    %v909 = vld [vmem:[#allocation13 + $0x2c] sm:$0xf]
    %v910 = vld [vmem:[#allocation13 + $0x30] sm:$0xf]
    %v911 = vld [vmem:[#allocation13 + $0x34] sm:$0xf]
    %v912 = vld [vmem:[#allocation13 + $0x38] sm:$0xf]
    %v913 = vld [vmem:[#allocation13 + $0x3c] sm:$0xf]
    %v930 = vunpack.c.l.b16 %v898
    %v931 = vunpack.c.l.b16 %v899
    %v932 = vunpack.c.l.b16 %v900
    %v933 = vunpack.c.l.b16 %v901
    %v934 = vunpack.c.l.b16 %v902
    %v935 = vunpack.c.l.b16 %v903
    %v936 = vunpack.c.l.b16 %v904
    %v937 = vunpack.c.l.b16 %v905
    %v938 = vunpack.c.l.b16 %v906
    %v939 = vunpack.c.l.b16 %v907
    %v940 = vunpack.c.l.b16 %v908
    %v941 = vunpack.c.l.b16 %v909
    %v942 = vunpack.c.l.b16 %v910
    %v943 = vunpack.c.l.b16 %v911
    %v944 = vunpack.c.l.b16 %v912
    %v945 = vunpack.c.l.b16 %v913
    %v946 = vpack.c.b16 %v931, %v930
    %v947 = vpack.c.b16 %v933, %v932
    %v948 = vpack.c.b16 %v935, %v934
    %v949 = vpack.c.b16 %v937, %v936
    %v950 = vpack.c.b16 %v939, %v938
    %v951 = vpack.c.b16 %v941, %v940
    %v952 = vpack.c.b16 %v943, %v942
    %v953 = vpack.c.b16 %v945, %v944
    %962 = vmatprep.subr.bf16.mxu0 0
    %963 = vmatpush1.bf16.msra.mxu0 %v953
    %964 = vmatprep.subr.bf16.mxu0 0
    %965 = vmatpush1.bf16.msra.mxu0 %v952
    %966 = vmatprep.subr.bf16.mxu0 0
    %967 = vmatpush1.bf16.msra.mxu0 %v951
    %968 = vmatprep.subr.bf16.mxu0 0
    %969 = vmatpush1.bf16.msra.mxu0 %v950
    %970 = vmatprep.subr.bf16.mxu0 0
    %971 = vmatpush1.bf16.msra.mxu0 %v949
    %972 = vmatprep.subr.bf16.mxu0 0
    %973 = vmatpush1.bf16.msra.mxu0 %v948
    %974 = vmatprep.subr.bf16.mxu0 0
    %975 = vmatpush1.bf16.msra.mxu0 %v947
    %976 = vmatprep.subr.bf16.mxu0 0
    %977 = vmatpush1.bf16.msra.mxu0 %v946
    %978 = vmatprep.subr.bf16.mxu0 0
    %979 = vmatpush2.bf16.msra.mxu0 0
    %980 = vmatprep.subr.bf16.mxu0 0
    %981 = vmatpush2.bf16.msra.mxu0 0
    %982 = vmatprep.subr.bf16.mxu0 0
    %983 = vmatpush2.bf16.msra.mxu0 0
    %984 = vmatprep.subr.bf16.mxu0 0
    %985 = vmatpush2.bf16.msra.mxu0 0
    %986 = vmatprep.subr.bf16.mxu0 0
    %987 = vmatpush2.bf16.msra.mxu0 0
    %988 = vmatprep.subr.bf16.mxu0 0
    %989 = vmatpush2.bf16.msra.mxu0 0
    %990 = vmatprep.subr.bf16.mxu0 0
    %991 = vmatpush2.bf16.msra.mxu0 0
    %992 = vmatprep.subr.bf16.mxu0 0
    %993 = vmatpush2.bf16.msra.mxu0 0
    %994 = vmatprep.mubr.bf16.mxu0 0
    %995 = vmatmul.mubr.bf16.gmra.mxu0 %v542
    %v996 = vpop.f32.mrf.mxu0
    %v997 = vadd.f32 0.0, %v996
    %v998 = vpop.f32.mrf.mxu0
    %v999 = vpop.f32.mrf.mxu0
    %v1000 = vpop.f32.mrf.mxu0
    %1001 = vdwg.mxu0
    %v1018 = vunpack.c.l.b16 %v882
    %v1019 = vunpack.c.l.b16 %v883
    %v1020 = vunpack.c.l.b16 %v884
    %v1021 = vunpack.c.l.b16 %v885
    %v1022 = vunpack.c.l.b16 %v886
    %v1023 = vunpack.c.l.b16 %v887
    %v1024 = vunpack.c.l.b16 %v888
    %v1025 = vunpack.c.l.b16 %v889
    %v1026 = vunpack.c.l.b16 %v890
    %v1027 = vunpack.c.l.b16 %v891
    %v1028 = vunpack.c.l.b16 %v892
    %v1029 = vunpack.c.l.b16 %v893
    %v1030 = vunpack.c.l.b16 %v894
    %v1031 = vunpack.c.l.b16 %v895
    %v1032 = vunpack.c.l.b16 %v896
    %v1033 = vunpack.c.l.b16 %v897
    %v1034 = vpack.c.b16 %v1019, %v1018
    %v1035 = vpack.c.b16 %v1021, %v1020
    %v1036 = vpack.c.b16 %v1023, %v1022
    %v1037 = vpack.c.b16 %v1025, %v1024
    %v1038 = vpack.c.b16 %v1027, %v1026
    %v1039 = vpack.c.b16 %v1029, %v1028
    %v1040 = vpack.c.b16 %v1031, %v1030
    %v1041 = vpack.c.b16 %v1033, %v1032
    %1050 = vmatprep.subr.bf16.mxu0 0
    %1051 = vmatpush1.bf16.msra.mxu0 %v1041
    %1052 = vmatprep.subr.bf16.mxu0 0
    %1053 = vmatpush1.bf16.msra.mxu0 %v1040
    %1054 = vmatprep.subr.bf16.mxu0 0
    %1055 = vmatpush1.bf16.msra.mxu0 %v1039
    %1056 = vmatprep.subr.bf16.mxu0 0
    %1057 = vmatpush1.bf16.msra.mxu0 %v1038
    %1058 = vmatprep.subr.bf16.mxu0 0
    %1059 = vmatpush1.bf16.msra.mxu0 %v1037
    %1060 = vmatprep.subr.bf16.mxu0 0
    %1061 = vmatpush1.bf16.msra.mxu0 %v1036
    %1062 = vmatprep.subr.bf16.mxu0 0
    %1063 = vmatpush1.bf16.msra.mxu0 %v1035
    %1064 = vmatprep.subr.bf16.mxu0 0
    %1065 = vmatpush1.bf16.msra.mxu0 %v1034
    %1066 = vmatprep.subr.bf16.mxu0 0
    %1067 = vmatpush2.bf16.msra.mxu0 0
    %1068 = vmatprep.subr.bf16.mxu0 0
    %1069 = vmatpush2.bf16.msra.mxu0 0
    %1070 = vmatprep.subr.bf16.mxu0 0
    %1071 = vmatpush2.bf16.msra.mxu0 0
    %1072 = vmatprep.subr.bf16.mxu0 0
    %1073 = vmatpush2.bf16.msra.mxu0 0
    %1074 = vmatprep.subr.bf16.mxu0 0
    %1075 = vmatpush2.bf16.msra.mxu0 0
    %1076 = vmatprep.subr.bf16.mxu0 0
    %1077 = vmatpush2.bf16.msra.mxu0 0
    %1078 = vmatprep.subr.bf16.mxu0 0
    %1079 = vmatpush2.bf16.msra.mxu0 0
    %1080 = vmatprep.subr.bf16.mxu0 0
    %1081 = vmatpush2.bf16.msra.mxu0 0
    %1082 = vmatprep.mubr.bf16.mxu0 0
    %1083 = vmatmul.mubr.bf16.gmra.mxu0 %v881
    %v1084 = vpop.f32.mrf.mxu0
    %v1085 = vadd.f32 %v997, %v1084
    %v1086 = vpop.f32.mrf.mxu0
    %v1087 = vpop.f32.mrf.mxu0
    %v1088 = vpop.f32.mrf.mxu0
    %1089 = vdwg.mxu0
    %v1090 = vld [vmem:[%s15] sm:$0x1]
    %v1092 = vlaneseq
    %v1093 = vshrl.u32 %v1092, 7
    %v1094 = vsub.s32 0, %v1093
    %v1095 = vrot.slane %v1090, %v1094
    %v1097 = vadd.f32 %v1085, %v1095
    %v1098 = vpack.c.bf16 %v1097, %v1097
    %v1099 = vmax.bf16 %v1098, 0
    %v1100 = vld [vmem:[#allocation15] sm:$0xf]
    %v1101 = vld [vmem:[#allocation15 + $0x4] sm:$0xf]
    %v1102 = vld [vmem:[#allocation15 + $0x8] sm:$0xf]
    %v1103 = vld [vmem:[#allocation15 + $0xc] sm:$0xf]
    %v1104 = vld [vmem:[#allocation15 + $0x10] sm:$0xf]
    %v1105 = vld [vmem:[#allocation15 + $0x14] sm:$0xf]
    %v1106 = vld [vmem:[#allocation15 + $0x18] sm:$0xf]
    %v1107 = vld [vmem:[#allocation15 + $0x1c] sm:$0xf]
    %v1108 = vld [vmem:[#allocation15 + $0x20] sm:$0xf]
    %v1109 = vld [vmem:[#allocation15 + $0x24] sm:$0xf]
    %v1110 = vld [vmem:[#allocation15 + $0x28] sm:$0xf]
    %v1111 = vld [vmem:[#allocation15 + $0x2c] sm:$0xf]
    %v1112 = vld [vmem:[#allocation15 + $0x30] sm:$0xf]
    %v1113 = vld [vmem:[#allocation15 + $0x34] sm:$0xf]
    %v1114 = vld [vmem:[#allocation15 + $0x38] sm:$0xf]
    %v1115 = vld [vmem:[#allocation15 + $0x3c] sm:$0xf]
    %v1116 = vld [vmem:[%s17] sm:$0x1]
    %v1118 = vlaneseq
    %v1119 = vshrl.u32 %v1118, 7
    %v1120 = vsub.s32 0, %v1119
    %v1121 = vrot.slane %v1116, %v1120
    %v1139 = vunpack.c.l.b16 %v1100
    %v1140 = vunpack.c.l.b16 %v1101
    %v1141 = vunpack.c.l.b16 %v1102
    %v1142 = vunpack.c.l.b16 %v1103
    %v1143 = vunpack.c.l.b16 %v1104
    %v1144 = vunpack.c.l.b16 %v1105
    %v1145 = vunpack.c.l.b16 %v1106
    %v1146 = vunpack.c.l.b16 %v1107
    %v1147 = vunpack.c.l.b16 %v1108
    %v1148 = vunpack.c.l.b16 %v1109
    %v1149 = vunpack.c.l.b16 %v1110
    %v1150 = vunpack.c.l.b16 %v1111
    %v1151 = vunpack.c.l.b16 %v1112
    %v1152 = vunpack.c.l.b16 %v1113
    %v1153 = vunpack.c.l.b16 %v1114
    %v1154 = vunpack.c.l.b16 %v1115
    %v1155 = vpack.c.b16 %v1140, %v1139
    %v1156 = vpack.c.b16 %v1142, %v1141
    %v1157 = vpack.c.b16 %v1144, %v1143
    %v1158 = vpack.c.b16 %v1146, %v1145
    %v1159 = vpack.c.b16 %v1148, %v1147
    %v1160 = vpack.c.b16 %v1150, %v1149
    %v1161 = vpack.c.b16 %v1152, %v1151
    %v1162 = vpack.c.b16 %v1154, %v1153
    %1171 = vmatprep.subr.bf16.mxu0 0
    %1172 = vmatpush1.bf16.msra.mxu0 %v1162
    %1173 = vmatprep.subr.bf16.mxu0 0
    %1174 = vmatpush1.bf16.msra.mxu0 %v1161
    %1175 = vmatprep.subr.bf16.mxu0 0
    %1176 = vmatpush1.bf16.msra.mxu0 %v1160
    %1177 = vmatprep.subr.bf16.mxu0 0
    %1178 = vmatpush1.bf16.msra.mxu0 %v1159
    %1179 = vmatprep.subr.bf16.mxu0 0
    %1180 = vmatpush1.bf16.msra.mxu0 %v1158
    %1181 = vmatprep.subr.bf16.mxu0 0
    %1182 = vmatpush1.bf16.msra.mxu0 %v1157
    %1183 = vmatprep.subr.bf16.mxu0 0
    %1184 = vmatpush1.bf16.msra.mxu0 %v1156
    %1185 = vmatprep.subr.bf16.mxu0 0
    %1186 = vmatpush1.bf16.msra.mxu0 %v1155
    %1187 = vmatprep.subr.bf16.mxu0 0
    %1188 = vmatpush2.bf16.msra.mxu0 0
    %1189 = vmatprep.subr.bf16.mxu0 0
    %1190 = vmatpush2.bf16.msra.mxu0 0
    %1191 = vmatprep.subr.bf16.mxu0 0
    %1192 = vmatpush2.bf16.msra.mxu0 0
    %1193 = vmatprep.subr.bf16.mxu0 0
    %1194 = vmatpush2.bf16.msra.mxu0 0
    %1195 = vmatprep.subr.bf16.mxu0 0
    %1196 = vmatpush2.bf16.msra.mxu0 0
    %1197 = vmatprep.subr.bf16.mxu0 0
    %1198 = vmatpush2.bf16.msra.mxu0 0
    %1199 = vmatprep.subr.bf16.mxu0 0
    %1200 = vmatpush2.bf16.msra.mxu0 0
    %1201 = vmatprep.subr.bf16.mxu0 0
    %1202 = vmatpush2.bf16.msra.mxu0 0
    %1203 = vmatprep.mubr.bf16.mxu0 0
    %1204 = vmatmul.mubr.bf16.gmra.mxu0 %v1099
    %v1205 = vpop.f32.mrf.mxu0
    %v1206 = vadd.f32 %v1121, %v1205
    %v1207 = vpop.f32.mrf.mxu0
    %v1208 = vpop.f32.mrf.mxu0
    %v1209 = vpop.f32.mrf.mxu0
    %1210 = vdwg.mxu0
    %v1211 = vpack.c.bf16 %v1206, %v1206
    %v1212 = vmax.bf16 %v1211, 0
    %v1213 = vld [vmem:[#allocation16] sm:$0xf]
    %v1214 = vld [vmem:[#allocation16 + $0x4] sm:$0xf]
    %v1215 = vld [vmem:[#allocation16 + $0x8] sm:$0xf]
    %v1216 = vld [vmem:[#allocation16 + $0xc] sm:$0xf]
    %v1217 = vld [vmem:[#allocation16 + $0x10] sm:$0xf]
    %v1218 = vld [vmem:[#allocation16 + $0x14] sm:$0xf]
    %v1219 = vld [vmem:[#allocation16 + $0x18] sm:$0xf]
    %v1220 = vld [vmem:[#allocation16 + $0x1c] sm:$0xf]
    %v1221 = vld [vmem:[#allocation16 + $0x20] sm:$0xf]
    %v1222 = vld [vmem:[#allocation16 + $0x24] sm:$0xf]
    %v1223 = vld [vmem:[#allocation16 + $0x28] sm:$0xf]
    %v1224 = vld [vmem:[#allocation16 + $0x2c] sm:$0xf]
    %v1225 = vld [vmem:[#allocation16 + $0x30] sm:$0xf]
    %v1226 = vld [vmem:[#allocation16 + $0x34] sm:$0xf]
    %v1227 = vld [vmem:[#allocation16 + $0x38] sm:$0xf]
    %v1228 = vld [vmem:[#allocation16 + $0x3c] sm:$0xf]
    %v1229 = vld [vmem:[%s19] sm:$0x1]
    %v1231 = vlaneseq
    %v1232 = vshrl.u32 %v1231, 7
    %v1233 = vsub.s32 0, %v1232
    %v1234 = vrot.slane %v1229, %v1233
    %v1252 = vunpack.c.l.b16 %v1213
    %v1253 = vunpack.c.l.b16 %v1214
    %v1254 = vunpack.c.l.b16 %v1215
    %v1255 = vunpack.c.l.b16 %v1216
    %v1256 = vunpack.c.l.b16 %v1217
    %v1257 = vunpack.c.l.b16 %v1218
    %v1258 = vunpack.c.l.b16 %v1219
    %v1259 = vunpack.c.l.b16 %v1220
    %v1260 = vunpack.c.l.b16 %v1221
    %v1261 = vunpack.c.l.b16 %v1222
    %v1262 = vunpack.c.l.b16 %v1223
    %v1263 = vunpack.c.l.b16 %v1224
    %v1264 = vunpack.c.l.b16 %v1225
    %v1265 = vunpack.c.l.b16 %v1226
    %v1266 = vunpack.c.l.b16 %v1227
    %v1267 = vunpack.c.l.b16 %v1228
    %v1268 = vpack.c.b16 %v1253, %v1252
    %v1269 = vpack.c.b16 %v1255, %v1254
    %v1270 = vpack.c.b16 %v1257, %v1256
    %v1271 = vpack.c.b16 %v1259, %v1258
    %v1272 = vpack.c.b16 %v1261, %v1260
    %v1273 = vpack.c.b16 %v1263, %v1262
    %v1274 = vpack.c.b16 %v1265, %v1264
    %v1275 = vpack.c.b16 %v1267, %v1266
    %1284 = vmatprep.subr.bf16.mxu0 0
    %1285 = vmatpush1.bf16.msra.mxu0 %v1275
    %1286 = vmatprep.subr.bf16.mxu0 0
    %1287 = vmatpush1.bf16.msra.mxu0 %v1274
    %1288 = vmatprep.subr.bf16.mxu0 0
    %1289 = vmatpush1.bf16.msra.mxu0 %v1273
    %1290 = vmatprep.subr.bf16.mxu0 0
    %1291 = vmatpush1.bf16.msra.mxu0 %v1272
    %1292 = vmatprep.subr.bf16.mxu0 0
    %1293 = vmatpush1.bf16.msra.mxu0 %v1271
    %1294 = vmatprep.subr.bf16.mxu0 0
    %1295 = vmatpush1.bf16.msra.mxu0 %v1270
    %1296 = vmatprep.subr.bf16.mxu0 0
    %1297 = vmatpush1.bf16.msra.mxu0 %v1269
    %1298 = vmatprep.subr.bf16.mxu0 0
    %1299 = vmatpush1.bf16.msra.mxu0 %v1268
    %1300 = vmatprep.subr.bf16.mxu0 0
    %1301 = vmatpush2.bf16.msra.mxu0 0
    %1302 = vmatprep.subr.bf16.mxu0 0
    %1303 = vmatpush2.bf16.msra.mxu0 0
    %1304 = vmatprep.subr.bf16.mxu0 0
    %1305 = vmatpush2.bf16.msra.mxu0 0
    %1306 = vmatprep.subr.bf16.mxu0 0
    %1307 = vmatpush2.bf16.msra.mxu0 0
    %1308 = vmatprep.subr.bf16.mxu0 0
    %1309 = vmatpush2.bf16.msra.mxu0 0
    %1310 = vmatprep.subr.bf16.mxu0 0
    %1311 = vmatpush2.bf16.msra.mxu0 0
    %1312 = vmatprep.subr.bf16.mxu0 0
    %1313 = vmatpush2.bf16.msra.mxu0 0
    %1314 = vmatprep.subr.bf16.mxu0 0
    %1315 = vmatpush2.bf16.msra.mxu0 0
    %1316 = vmatprep.mubr.bf16.mxu0 0
    %1317 = vmatmul.mubr.bf16.gmra.mxu0 %v1212
    %v1318 = vpop.f32.mrf.mxu0
    %v1319 = vadd.f32 %v1234, %v1318
    %v1320 = vpop.f32.mrf.mxu0
    %v1321 = vpop.f32.mrf.mxu0
    %v1322 = vpop.f32.mrf.mxu0
    %1323 = vdwg.mxu0
    %1324 = vst [vmem:[%s20] sm:$0xff] %v1319
    // Predicated region
    $region122: #{_lambda_.1} parent=1 // pred_check
      _
    $region123: #{_lambda_.1} parent=1 // pred_check_branch
      %1326 = sbr.rel (0) target = $region125
    $region124: #{_lambda_.1} parent=1 // pred_region
      _
    $region125: #{_lambda_.1} parent=1 // pred_fallthru
      _
    // Predicated region
    $region126: #{_lambda_.1} parent=1 // pred_check
      _
    $region127: #{_lambda_.1} parent=1 // pred_check_branch
      %1328 = sbr.rel (0) target = $region129
    $region128: #{_lambda_.1} parent=1 // pred_region
      _
    $region129: #{_lambda_.1} parent=1 // pred_fallthru
      _
    // Predicated region
    $region130: #{_lambda_.1} parent=1 // pred_check
      _
    $region131: #{_lambda_.1} parent=1 // pred_check_branch
      %1330 = sbr.rel (0) target = $region133
    $region132: #{_lambda_.1} parent=1 // pred_region
      _
    $region133: #{_lambda_.1} parent=1 // pred_fallthru
      _
    // Predicated region
    $region134: #{_lambda_.1} parent=1 // pred_check
      _
    $region135: #{_lambda_.1} parent=1 // pred_check_branch
      %1332 = sbr.rel (0) target = $region137
    $region136: #{_lambda_.1} parent=1 // pred_region
      _
    $region137: #{_lambda_.1} parent=1 // pred_fallthru
      _
    %1333 = vsyncpa [#allocation3], 1
    %1334 = vsyncpa [#allocation5], 1
    %1335 = vsyncpa [#allocation8], 1
    %1336 = vsyncpa [#allocation11], 1
    %1337 = vsyncpa [#allocation14], 1
    %1338 = vsyncpa [#allocation17], 1

</llo_original>
